<compile_context>
chip_gen: v5e
topology: v5e:2x2
jax: 0.10.0
libtpu: 0.0.40
codegen_flags: <defaults>
</compile_context>

<pallas_src>
import numpy as np

import jax
import jax.numpy as jnp
from jax.experimental import pallas as pl
from jax.experimental.pallas import tpu as pltpu


# ----------------------------- static config --------------------------------
IMG = 16            # square input image size
CIN = 3             # input channels
C = 16              # backbone channels
STRIDE = 2          # backbone downsample factor
HF = IMG // STRIDE  # feature map height == width (8)
A = 3               # anchors per location
ANCHOR_SIZES = (4.0, 8.0, 12.0)
R = 8               # proposals kept per image
POOL = 4            # ROI pool resolution
REP = 32            # box-head MLP width
NC = 5              # number of classes incl. background

ROWK = 3 * IMG * CIN          # conv1 row-patch contraction dim (144)
XC1 = IMG * C                 # lane-dense conv1 output row width (256)
XC2 = HF * C                  # lane-dense backbone feature row width (128)
RPN_OUT = A + 4 * A           # fused RPN cls+bbox channels per pixel (15)
RPN_PAD = 16                  # per-pixel RPN channels, padded (lane-dense rows)
HEAD_OUT = NC + 4 * NC        # fused box-head cls+bbox columns (25)
HEAD_PAD = 128                # padded so the output store is full 128 lanes
PPC = POOL * POOL * C         # fc6 contraction dim (256)


# ----------------------------- Pallas kernels --------------------------------
def _backbone_rpn_kernel(xrow_ref, w1_ref, b1_ref, w2_ref, b2_ref,
                         wr_ref, br_ref, wh_ref, bh_ref,
                         feat_ref, rpn_ref):
    """Per-image: conv1 -> conv2(stride 2) -> RPN 3x3 conv -> fused 1x1 heads.

    Activations stay VMEM-resident and lane-dense (y, x*C).  Every 3x3 conv is
    [static row shifts -> one banded-weight matmul]: 4 MXU pushes per image,
    zero gather matmuls, zero masked stores.
    """
    # conv1 (3x3, stride 1).  xrow rows are ordered [even y | odd y]; each row
    # already holds the 3 vertically adjacent (padded) input rows.
    h1 = jnp.dot(xrow_ref[...], w1_ref[...], preferred_element_type=jnp.float32)
    h1 = jnp.maximum(h1 + b1_ref[...], 0.0)                      # (IMG, IMG*C) f32

    # conv2 (3x3, stride 2): output row oy reads input rows 2oy-1 / 2oy / 2oy+1,
    # which are static slices of the parity-ordered h1 (+ one zero row).
    zero_row1 = jnp.zeros((1, XC1), jnp.float32)
    v_up = jnp.concatenate([zero_row1, h1[HF:2 * HF - 1, :]], axis=0)   # y = 2oy-1
    v_mid = h1[:HF, :]                                                  # y = 2oy
    v_dn = h1[HF:, :]                                                   # y = 2oy+1
    x2 = jnp.concatenate([v_up, v_mid, v_dn], axis=1).astype(jnp.bfloat16)
    feat = jnp.dot(x2, w2_ref[...], preferred_element_type=jnp.float32)
    feat = jnp.maximum(feat + b2_ref[...], 0.0)                  # (HF, HF*C) f32
    feat_ref[...] = feat.astype(jnp.bfloat16)                    # lane-dense (8,128)

    # RPN 3x3 conv (stride 1) on the VMEM-resident features.
    zero_row2 = jnp.zeros((1, XC2), jnp.float32)
    u_up = jnp.concatenate([zero_row2, feat[:HF - 1, :]], axis=0)
    u_dn = jnp.concatenate([feat[1:, :], zero_row2], axis=0)
    xr = jnp.concatenate([u_up, feat, u_dn], axis=1).astype(jnp.bfloat16)
    t = jnp.dot(xr, wr_ref[...], preferred_element_type=jnp.float32)
    t = jnp.maximum(t + br_ref[...], 0.0).astype(jnp.bfloat16)   # (HF, HF*C)

    # Fused RPN 1x1 cls+bbox heads, block-diagonal over x, padded to 16/pixel
    # so the output row is exactly 128 lanes.
    rpn = jnp.dot(t, wh_ref[...], preferred_element_type=jnp.float32) + bh_ref[...]
    rpn_ref[...] = rpn                                           # (HF, HF*RPN_PAD)


def _roi_head_kernel(pooled_ref, w6_ref, b6_ref, w7_ref, b7_ref,
                     wh_ref, bh_ref, out_ref):
    """Batch-folded ROI box head: fc6 -> fc7 -> fused cls+bbox (padded to 128)."""
    h6 = jnp.dot(pooled_ref[...], w6_ref[...], preferred_element_type=jnp.float32)
    h6 = jnp.maximum(h6 + b6_ref[...], 0.0).astype(jnp.bfloat16)      # (N*R, REP)
    h7 = jnp.dot(h6, w7_ref[...], preferred_element_type=jnp.float32) + b7_ref[...]
    h7 = jnp.maximum(h7, 0.0).astype(jnp.bfloat16)
    out_ref[...] = (jnp.dot(h7, wh_ref[...], preferred_element_type=jnp.float32)
                    + bh_ref[...])                                     # (N*R, 128)


# ------------------------------- box utilities --------------------------------
def decode_boxes(ref_boxes, deltas):
    w = ref_boxes[..., 2] - ref_boxes[..., 0]
    h = ref_boxes[..., 3] - ref_boxes[..., 1]
    cx = ref_boxes[..., 0] + 0.5 * w
    cy = ref_boxes[..., 1] + 0.5 * h
    dx, dy, dw, dh = (deltas[..., k] for k in range(4))
    pcx = dx * w + cx
    pcy = dy * h + cy
    pw = jnp.exp(jnp.minimum(dw, 4.0)) * w
    ph = jnp.exp(jnp.minimum(dh, 4.0)) * h
    return jnp.stack([pcx - 0.5 * pw, pcy - 0.5 * ph,
                      pcx + 0.5 * pw, pcy + 0.5 * ph], axis=-1)


def make_anchors():
    ys = (jnp.arange(HF, dtype=jnp.float32) + 0.5) * STRIDE
    xs = (jnp.arange(HF, dtype=jnp.float32) + 0.5) * STRIDE
    cy, cx = jnp.meshgrid(ys, xs, indexing="ij")
    cy = cy.reshape(-1)
    cx = cx.reshape(-1)
    per = []
    for s in ANCHOR_SIZES:
        half = s / 2.0
        per.append(jnp.stack([cx - half, cy - half, cx + half, cy + half], -1))
    return jnp.stack(per, axis=1)                                # (HF*HF, A, 4)


# ------------------------------- sub-modules ----------------------------------
def build_conv1_rows(images_nhwc):
    """(N,H,W,Cin) -> (N, IMG, 3*IMG*Cin) bf16 conv1 row-patches.  Rows ordered
    [even y | odd y] so the stride-2 conv2 inside the kernel only needs static
    unit-stride row slices (no strided loads, no reshapes in-kernel)."""
    n = images_nhwc.shape[0]
    xp = jnp.pad(images_nhwc, ((0, 0), (1, 1), (0, 0), (0, 0)))  # pad y by 1
    rows = jnp.concatenate(
        [xp[:, dy:dy + IMG, :, :].reshape(n, IMG, IMG * CIN) for dy in range(3)],
        axis=-1)                                                 # (N, IMG, 144)
    order = jnp.concatenate([jnp.arange(0, IMG, 2), jnp.arange(1, IMG, 2)])
    return jnp.take(rows, order, axis=1).astype(jnp.bfloat16)


def backbone_rpn(params, images_nhwc):
    """One fused pallas_call: backbone convs + RPN head, gridded over the batch."""
    n = images_nhwc.shape[0]
    rowpatch = build_conv1_rows(images_nhwc)                     # (N, 16, 144) bf16

    flops = 2 * n * (IMG * ROWK * XC1 + HF * (3 * XC1) * XC2
                     + HF * (3 * XC2) * XC2 + HF * XC2 * (HF * RPN_PAD))
    weight_elems = (ROWK * XC1 + 3 * XC1 * XC2 + 3 * XC2 * XC2
                    + XC2 * HF * RPN_PAD)
    bytes_accessed = (n * IMG * ROWK * 2 + weight_elems * 2
                      + n * HF * XC2 * 2 + n * HF * HF * RPN_PAD * 4)

    feat, rpn_raw = pl.pallas_call(
        _backbone_rpn_kernel,
        out_shape=(jax.ShapeDtypeStruct((n, HF, XC2), jnp.bfloat16),
                   jax.ShapeDtypeStruct((n, HF, HF * RPN_PAD), jnp.float32)),
        grid=(n,),
        in_specs=[
            pl.BlockSpec((None, IMG, ROWK), lambda i: (i, 0, 0)),
            pl.BlockSpec((ROWK, XC1), lambda i: (0, 0)),
            pl.BlockSpec((1, XC1), lambda i: (0, 0)),
            pl.BlockSpec((3 * XC1, XC2), lambda i: (0, 0)),
            pl.BlockSpec((1, XC2), lambda i: (0, 0)),
            pl.BlockSpec((3 * XC2, XC2), lambda i: (0, 0)),
            pl.BlockSpec((1, XC2), lambda i: (0, 0)),
            pl.BlockSpec((XC2, HF * RPN_PAD), lambda i: (0, 0)),
            pl.BlockSpec((1, HF * RPN_PAD), lambda i: (0, 0)),
        ],
        out_specs=(
            pl.BlockSpec((None, HF, XC2), lambda i: (i, 0, 0)),
            pl.BlockSpec((None, HF, HF * RPN_PAD), lambda i: (i, 0, 0)),
        ),
        compiler_params=pltpu.CompilerParams(dimension_semantics=("parallel",)),
        cost_estimate=pl.CostEstimate(flops=flops, transcendentals=0,
                                      bytes_accessed=bytes_accessed),
    )(rowpatch, params["w1"], params["b1"], params["w2"], params["b2"],
      params["wr"], params["br"], params["w_rpn_head"], params["b_rpn_head"])
    return feat, rpn_raw


def rpn_postprocess(rpn_raw):
    n = rpn_raw.shape[0]
    px = rpn_raw.reshape(n, HF, HF, RPN_PAD).reshape(n, HF * HF, RPN_PAD)
    logits = px[..., :A]                                         # (N, 64, A)
    deltas = px[..., A:A + 4 * A].reshape(n, HF * HF, A, 4)
    anchors = make_anchors()[None]                               # (1, 64, A, 4)
    boxes = decode_boxes(anchors, deltas)
    boxes = jnp.clip(boxes, 0.0, float(IMG)).reshape(n, -1, 4)
    scores = jax.nn.sigmoid(logits).reshape(n, -1)
    top_scores, top_idx = jax.lax.top_k(scores, R)
    proposals = jnp.take_along_axis(boxes, top_idx[:, :, None], axis=1)
    return proposals, top_scores


def roi_pool_gather(feat_flat, proposals):
    """Nearest-neighbor ROI pooling as an XLA row gather producing the fc6-ready
    (N*R, POOL*POOL*C) layout: no one-hot matmul, no extra (N,128,64) operand."""
    n = proposals.shape[0]
    x1, y1, x2, y2 = (proposals[..., k] for k in range(4))       # (N, R)
    g = (jnp.arange(POOL, dtype=jnp.float32) + 0.5) / POOL
    ix = (x1[..., None] + g * (x2 - x1)[..., None]) / STRIDE     # (N, R, POOL)
    iy = (y1[..., None] + g * (y2 - y1)[..., None]) / STRIDE
    ixi = jnp.clip(jnp.floor(ix).astype(jnp.int32), 0, HF - 1)
    iyi = jnp.clip(jnp.floor(iy).astype(jnp.int32), 0, HF - 1)
    pix = iyi[:, :, :, None] * HF + ixi[:, :, None, :]           # (N, R, py, px)
    pix = pix.reshape(n, R * POOL * POOL)
    pooled = jnp.take_along_axis(feat_flat, pix[..., None], axis=1)  # (N, R*PP, C)
    return pooled.reshape(n * R, PPC)                            # bf16


def roi_heads_forward(params, feat, proposals):
    n = feat.shape[0]
    nr = n * R
    feat_flat = feat.reshape(n, HF, HF, C).reshape(n, HF * HF, C)
    pooled = roi_pool_gather(feat_flat, proposals)               # (N*R, 256) bf16

    flops = 2 * nr * (PPC * REP + REP * REP + REP * HEAD_PAD)
    bytes_accessed = (nr * PPC * 2
                      + 2 * (PPC * REP + REP * REP + REP * HEAD_PAD)
                      + nr * HEAD_PAD * 4)
    head = pl.pallas_call(
        _roi_head_kernel,
        out_shape=jax.ShapeDtypeStruct((nr, HEAD_PAD), jnp.float32),
        grid=(1,),
        in_specs=[
            pl.BlockSpec((nr, PPC), lambda i: (0, 0)),
            pl.BlockSpec((PPC, REP), lambda i: (0, 0)),
            pl.BlockSpec((1, REP), lambda i: (0, 0)),
            pl.BlockSpec((REP, REP), lambda i: (0, 0)),
            pl.BlockSpec((1, REP), lambda i: (0, 0)),
            pl.BlockSpec((REP, HEAD_PAD), lambda i: (0, 0)),
            pl.BlockSpec((1, HEAD_PAD), lambda i: (0, 0)),
        ],
        out_specs=pl.BlockSpec((nr, HEAD_PAD), lambda i: (0, 0)),
        cost_estimate=pl.CostEstimate(flops=flops, transcendentals=0,
                                      bytes_accessed=bytes_accessed),
    )(pooled, params["w6"], params["b6"], params["w7"], params["b7"],
      params["w_box_head"], params["b_box_head"])

    cls_logits = head[:, :NC]
    box_deltas = head[:, NC:NC + 4 * NC].reshape(nr, NC, 4)
    probs = jax.nn.softmax(cls_logits, axis=-1)
    labels = jnp.argmax(probs[:, 1:], axis=-1) + 1               # skip background
    scores = jnp.take_along_axis(probs, labels[:, None], axis=1)[:, 0]
    sel = jnp.take_along_axis(box_deltas, labels[:, None, None], axis=1)[:, 0]
    boxes = decode_boxes(proposals.reshape(-1, 4), sel)
    boxes = jnp.clip(boxes, 0.0, float(IMG))
    return {"boxes": boxes.reshape(n, R, 4),
            "scores": scores.reshape(n, R),
            "labels": labels.reshape(n, R)}


def generalized_rcnn_forward(params, images_nchw):
    """Inference path of GeneralizedRCNN.forward: backbone -> rpn -> roi_heads."""
    images = jnp.transpose(images_nchw, (0, 2, 3, 1))            # NHWC once
    features, rpn_raw = backbone_rpn(params, images)
    proposals, _proposal_scores = rpn_postprocess(rpn_raw)
    result = roi_heads_forward(params, features, proposals)
    return result


# ------------------------------ parameter init -------------------------------
def init_params(key):
    """PyTorch-layout weights, as the nn.Module would hold them."""
    ks = jax.random.split(key, 9)

    def conv_w(k, cout, cin, kh, kw):
        return jax.random.normal(k, (cout, cin, kh, kw), jnp.float32) * 0.01

    def lin_w(k, kin, kout):
        return jax.random.normal(k, (kin, kout), jnp.float32) * 0.01

    return dict(
        bb1_w=conv_w(ks[0], C, CIN, 3, 3), bb1_b=jnp.zeros((C,)),
        bb2_w=conv_w(ks[1], C, C, 3, 3), bb2_b=jnp.zeros((C,)),
        rpn_conv_w=conv_w(ks[2], C, C, 3, 3), rpn_conv_b=jnp.zeros((C,)),
        rpn_cls_w=conv_w(ks[3], A, C, 1, 1), rpn_cls_b=jnp.zeros((A,)),
        rpn_bbox_w=conv_w(ks[4], 4 * A, C, 1, 1), rpn_bbox_b=jnp.zeros((4 * A,)),
        fc6_w=lin_w(ks[5], C * POOL * POOL, REP), fc6_b=jnp.zeros((REP,)),
        fc7_w=lin_w(ks[6], REP, REP), fc7_b=jnp.zeros((REP,)),
        cls_w=lin_w(ks[7], REP, NC), cls_b=jnp.zeros((NC,)),
        bbox_w=lin_w(ks[8], REP, 4 * NC), bbox_b=jnp.zeros((4 * NC,)),
    )


def _band_conv_weight(w, w_in, w_out, stride, cin, cout):
    """Torch (cout,cin,3,3) conv weight -> (3*w_in*cin, w_out*cout) banded matrix
    acting on lane-dense rows.  Row index = dy*w_in*cin + ix*cin + ci, column
    index = ox*cout + co; horizontal taps + x zero-padding live in the band."""
    w = np.asarray(w, np.float32)
    m = np.zeros((3 * w_in * cin, w_out * cout), np.float32)
    for dy in range(3):
        for ox in range(w_out):
            for dx in range(3):
                ix = stride * ox + dx - 1
                if 0 <= ix < w_in:
                    r = dy * w_in * cin + ix * cin
                    m[r:r + cin, ox * cout:(ox + 1) * cout] = w[:, :, dy, dx].T
    return m


def _blockdiag_1x1(w_px, b_px, nx, out_pad):
    """Per-pixel (cin, cout) 1x1-conv weight -> block-diagonal (nx*cin, nx*out_pad)
    matrix + tiled bias so the head output row stays a full 128-lane store."""
    cin, cout = w_px.shape
    m = np.zeros((nx * cin, nx * out_pad), np.float32)
    b = np.zeros((1, nx * out_pad), np.float32)
    for x in range(nx):
        m[x * cin:(x + 1) * cin, x * out_pad:x * out_pad + cout] = w_px
        b[0, x * out_pad:x * out_pad + cout] = b_px
    return m, b


def pack_params(p):
    """ONE-TIME packing: banded conv weights, block-diag fused heads, tiled
    biases, fc6 flatten-order fix, 128-lane padding, bf16 casts."""
    bf = jnp.bfloat16
    w1 = _band_conv_weight(p["bb1_w"], IMG, IMG, 1, CIN, C)      # (144, 256)
    w2 = _band_conv_weight(p["bb2_w"], IMG, HF, STRIDE, C, C)    # (768, 128)
    wr = _band_conv_weight(p["rpn_conv_w"], HF, HF, 1, C, C)     # (384, 128)

    w_rpn_px = np.concatenate([np.asarray(p["rpn_cls_w"])[:, :, 0, 0].T,
                               np.asarray(p["rpn_bbox_w"])[:, :, 0, 0].T], axis=1)
    b_rpn_px = np.concatenate([np.asarray(p["rpn_cls_b"]),
                               np.asarray(p["rpn_bbox_b"])])
    whd, bhd = _blockdiag_1x1(w_rpn_px, b_rpn_px, HF, RPN_PAD)   # (128,128),(1,128)

    # fc6: pooled rows are laid out ((py,px), c); torch flattens (c, py, px).
    w6 = np.asarray(p["fc6_w"]).reshape(C, POOL, POOL, REP)
    w6 = w6.transpose(1, 2, 0, 3).reshape(PPC, REP)

    w_box = np.concatenate([np.asarray(p["cls_w"]), np.asarray(p["bbox_w"])], axis=1)
    w_box_pad = np.zeros((REP, HEAD_PAD), np.float32)
    w_box_pad[:, :HEAD_OUT] = w_box
    b_box_pad = np.zeros((1, HEAD_PAD), np.float32)
    b_box_pad[0, :HEAD_OUT] = np.concatenate([np.asarray(p["cls_b"]),
                                              np.asarray(p["bbox_b"])])

    return dict(
        w1=jnp.asarray(w1, bf),
        b1=jnp.asarray(np.tile(np.asarray(p["bb1_b"]), IMG), jnp.float32)[None, :],
        w2=jnp.asarray(w2, bf),
        b2=jnp.asarray(np.tile(np.asarray(p["bb2_b"]), HF), jnp.float32)[None, :],
        wr=jnp.asarray(wr, bf),
        br=jnp.asarray(np.tile(np.asarray(p["rpn_conv_b"]), HF), jnp.float32)[None, :],
        w_rpn_head=jnp.asarray(whd, bf), b_rpn_head=jnp.asarray(bhd),
        w6=jnp.asarray(w6, bf), b6=jnp.asarray(p["fc6_b"], jnp.float32)[None, :],
        w7=jnp.asarray(p["fc7_w"], bf), b7=jnp.asarray(p["fc7_b"], jnp.float32)[None, :],
        w_box_head=jnp.asarray(w_box_pad, bf), b_box_head=jnp.asarray(b_box_pad),
    )


# ----------------------------------- main ------------------------------------
if __name__ == "__main__":
    key = jax.random.PRNGKey(0)
    pkey, ikey = jax.random.split(key)
    params = pack_params(init_params(pkey))          # packed once, outside jit
    # images.tensors from to_image_list(): NCHW batch of padded images.
    images = jax.random.normal(ikey, (2, CIN, IMG, IMG), jnp.float32)

    result = jax.jit(generalized_rcnn_forward)(params, images)
    jax.tree_util.tree_map(jax.block_until_ready, result)
    print("KERNEL_OK")
</pallas_src>

<mosaic_0001>
module attributes {stable_mosaic.version = 11 : i64} {
  func.func @_backbone_rpn_kernel(%arg0: i32, %arg1: memref<1x16x144xbf16, #tpu.memory_space<vmem>>, %arg2: memref<144x256xbf16, #tpu.memory_space<vmem>>, %arg3: memref<1x256xf32, #tpu.memory_space<vmem>>, %arg4: memref<768x128xbf16, #tpu.memory_space<vmem>>, %arg5: memref<1x128xf32, #tpu.memory_space<vmem>>, %arg6: memref<384x128xbf16, #tpu.memory_space<vmem>>, %arg7: memref<1x128xf32, #tpu.memory_space<vmem>>, %arg8: memref<128x128xbf16, #tpu.memory_space<vmem>>, %arg9: memref<1x128xf32, #tpu.memory_space<vmem>>, %arg10: memref<1x8x128xbf16, #tpu.memory_space<vmem>>, %arg11: memref<1x8x128xf32, #tpu.memory_space<vmem>>) attributes {dimension_semantics = [#tpu.dimension_semantics<parallel>], iteration_bounds = array<i64: 2>, scalar_prefetch = 0 : i64, scratch_operands = 0 : i64, tpu.core_type = #tpu.core_type<tc>, window_params = [{transform_indices = @transform_0, window_bounds = array<i64: 1, 16, 144>}, {pipeline_mode = #tpu.pipeline_mode<synchronous>, transform_indices = @transform_1, window_bounds = array<i64: 144, 256>}, {pipeline_mode = #tpu.pipeline_mode<synchronous>, transform_indices = @transform_2, window_bounds = array<i64: 1, 256>}, {pipeline_mode = #tpu.pipeline_mode<synchronous>, transform_indices = @transform_3, window_bounds = array<i64: 768, 128>}, {pipeline_mode = #tpu.pipeline_mode<synchronous>, transform_indices = @transform_4, window_bounds = array<i64: 1, 128>}, {pipeline_mode = #tpu.pipeline_mode<synchronous>, transform_indices = @transform_5, window_bounds = array<i64: 384, 128>}, {pipeline_mode = #tpu.pipeline_mode<synchronous>, transform_indices = @transform_6, window_bounds = array<i64: 1, 128>}, {pipeline_mode = #tpu.pipeline_mode<synchronous>, transform_indices = @transform_7, window_bounds = array<i64: 128, 128>}, {pipeline_mode = #tpu.pipeline_mode<synchronous>, transform_indices = @transform_8, window_bounds = array<i64: 1, 128>}, {transform_indices = @transform_9, window_bounds = array<i64: 1, 8, 128>}, {transform_indices = @transform_10, window_bounds = array<i64: 1, 8, 128>}]} {
    %c0 = arith.constant 0 : index
    %c0_0 = arith.constant 0 : index
    %c0_1 = arith.constant 0 : index
    %0 = vector.load %arg1[%c0, %c0_0, %c0_1] : memref<1x16x144xbf16, #tpu.memory_space<vmem>>, vector<1x16x144xbf16>
    %1 = vector.shape_cast %0 : vector<1x16x144xbf16> to vector<16x144xbf16>
    %c0_2 = arith.constant 0 : index
    %c0_3 = arith.constant 0 : index
    %2 = vector.load %arg2[%c0_2, %c0_3] : memref<144x256xbf16, #tpu.memory_space<vmem>>, vector<144x256xbf16>
    %cst = arith.constant dense<0.000000e+00> : vector<16x256xf32>
    %3 = tpu.matmul %1, %2, %cst {dimension_numbers = #tpu.dot_dimension_numbers<[1], [0], [0], [1], [0, 0, 1, 1], [], []>} : vector<16x144xbf16>, vector<144x256xbf16>, vector<16x256xf32> -> vector<16x256xf32>
    %c0_4 = arith.constant 0 : index
    %c0_5 = arith.constant 0 : index
    %4 = vector.load %arg3[%c0_4, %c0_5] : memref<1x256xf32, #tpu.memory_space<vmem>>, vector<1x256xf32>
    %5 = vector.broadcast %4 : vector<1x256xf32> to vector<16x256xf32>
    %6 = arith.addf %3, %5 : vector<16x256xf32>
    %cst_6 = arith.constant 0.000000e+00 : f32
    %7 = vector.broadcast %cst_6 : f32 to vector<16x256xf32>
    %8 = arith.maximumf %6, %7 : vector<16x256xf32>
    %cst_7 = arith.constant 0.000000e+00 : f32
    %9 = vector.broadcast %cst_7 : f32 to vector<1x256xf32>
    %10 = vector.extract_strided_slice %8 {offsets = [8, 0], sizes = [7, 256], strides = [1, 1]} : vector<16x256xf32> to vector<7x256xf32>
    %11 = tpu.concatenate %9, %10 in 0 : vector<1x256xf32>, vector<7x256xf32> -> vector<8x256xf32>
    %12 = vector.extract_strided_slice %8 {offsets = [0, 0], sizes = [8, 256], strides = [1, 1]} : vector<16x256xf32> to vector<8x256xf32>
    %13 = vector.extract_strided_slice %8 {offsets = [8, 0], sizes = [8, 256], strides = [1, 1]} : vector<16x256xf32> to vector<8x256xf32>
    %14 = tpu.concatenate %11, %12, %13 in 1 : vector<8x256xf32>, vector<8x256xf32>, vector<8x256xf32> -> vector<8x768xf32>
    %15 = arith.truncf %14 : vector<8x768xf32> to vector<8x768xbf16>
    %c0_8 = arith.constant 0 : index
    %c0_9 = arith.constant 0 : index
    %16 = vector.load %arg4[%c0_8, %c0_9] : memref<768x128xbf16, #tpu.memory_space<vmem>>, vector<768x128xbf16>
    %cst_10 = arith.constant dense<0.000000e+00> : vector<8x128xf32>
    %17 = tpu.matmul %15, %16, %cst_10 {dimension_numbers = #tpu.dot_dimension_numbers<[1], [0], [0], [1], [0, 0, 1, 1], [], []>} : vector<8x768xbf16>, vector<768x128xbf16>, vector<8x128xf32> -> vector<8x128xf32>
    %c0_11 = arith.constant 0 : index
    %c0_12 = arith.constant 0 : index
    %18 = vector.load %arg5[%c0_11, %c0_12] : memref<1x128xf32, #tpu.memory_space<vmem>>, vector<1x128xf32>
    %19 = vector.broadcast %18 : vector<1x128xf32> to vector<8x128xf32>
    %20 = arith.addf %17, %19 : vector<8x128xf32>
    %cst_13 = arith.constant 0.000000e+00 : f32
    %21 = vector.broadcast %cst_13 : f32 to vector<8x128xf32>
    %22 = arith.maximumf %20, %21 : vector<8x128xf32>
    %23 = arith.truncf %22 : vector<8x128xf32> to vector<8x128xbf16>
    %c0_14 = arith.constant 0 : index
    %c0_15 = arith.constant 0 : index
    %c0_16 = arith.constant 0 : index
    %24 = vector.load %arg10[%c0_14, %c0_15, %c0_16] : memref<1x8x128xbf16, #tpu.memory_space<vmem>>, vector<1x8x128xbf16>
    %25 = vector.shape_cast %24 : vector<1x8x128xbf16> to vector<8x128xbf16>
    %26 = vector.shape_cast %23 : vector<8x128xbf16> to vector<1x8x128xbf16>
    tpu.vector_store %arg10[%c0_14, %c0_15, %c0_16], %26 {strides = array<i32>} : memref<1x8x128xbf16, #tpu.memory_space<vmem>>, vector<1x8x128xbf16>,
    %cst_17 = arith.constant 0.000000e+00 : f32
    %27 = vector.broadcast %cst_17 : f32 to vector<1x128xf32>
    %28 = vector.extract_strided_slice %22 {offsets = [0, 0], sizes = [7, 128], strides = [1, 1]} : vector<8x128xf32> to vector<7x128xf32>
    %29 = tpu.concatenate %27, %28 in 0 : vector<1x128xf32>, vector<7x128xf32> -> vector<8x128xf32>
    %30 = vector.extract_strided_slice %22 {offsets = [1, 0], sizes = [7, 128], strides = [1, 1]} : vector<8x128xf32> to vector<7x128xf32>
    %31 = tpu.concatenate %30, %27 in 0 : vector<7x128xf32>, vector<1x128xf32> -> vector<8x128xf32>
    %32 = tpu.concatenate %29, %22, %31 in 1 : vector<8x128xf32>, vector<8x128xf32>, vector<8x128xf32> -> vector<8x384xf32>
    %33 = arith.truncf %32 : vector<8x384xf32> to vector<8x384xbf16>
    %c0_18 = arith.constant 0 : index
    %c0_19 = arith.constant 0 : index
    %34 = vector.load %arg6[%c0_18, %c0_19] : memref<384x128xbf16, #tpu.memory_space<vmem>>, vector<384x128xbf16>
    %cst_20 = arith.constant dense<0.000000e+00> : vector<8x128xf32>
    %35 = tpu.matmul %33, %34, %cst_20 {dimension_numbers = #tpu.dot_dimension_numbers<[1], [0], [0], [1], [0, 0, 1, 1], [], []>} : vector<8x384xbf16>, vector<384x128xbf16>, vector<8x128xf32> -> vector<8x128xf32>
    %c0_21 = arith.constant 0 : index
    %c0_22 = arith.constant 0 : index
    %36 = vector.load %arg7[%c0_21, %c0_22] : memref<1x128xf32, #tpu.memory_space<vmem>>, vector<1x128xf32>
    %37 = vector.broadcast %36 : vector<1x128xf32> to vector<8x128xf32>
    %38 = arith.addf %35, %37 : vector<8x128xf32>
    %cst_23 = arith.constant 0.000000e+00 : f32
    %39 = vector.broadcast %cst_23 : f32 to vector<8x128xf32>
    %40 = arith.maximumf %38, %39 : vector<8x128xf32>
    %41 = arith.truncf %40 : vector<8x128xf32> to vector<8x128xbf16>
    %c0_24 = arith.constant 0 : index
    %c0_25 = arith.constant 0 : index
    %42 = vector.load %arg8[%c0_24, %c0_25] : memref<128x128xbf16, #tpu.memory_space<vmem>>, vector<128x128xbf16>
    %cst_26 = arith.constant dense<0.000000e+00> : vector<8x128xf32>
    %43 = tpu.matmul %41, %42, %cst_26 {dimension_numbers = #tpu.dot_dimension_numbers<[1], [0], [0], [1], [0, 0, 1, 1], [], []>} : vector<8x128xbf16>, vector<128x128xbf16>, vector<8x128xf32> -> vector<8x128xf32>
    %c0_27 = arith.constant 0 : index
    %c0_28 = arith.constant 0 : index
    %44 = vector.load %arg9[%c0_27, %c0_28] : memref<1x128xf32, #tpu.memory_space<vmem>>, vector<1x128xf32>
    %45 = vector.broadcast %44 : vector<1x128xf32> to vector<8x128xf32>
    %46 = arith.addf %43, %45 : vector<8x128xf32>
    %c0_29 = arith.constant 0 : index
    %c0_30 = arith.constant 0 : index
    %c0_31 = arith.constant 0 : index
    %47 = vector.load %arg11[%c0_29, %c0_30, %c0_31] : memref<1x8x128xf32, #tpu.memory_space<vmem>>, vector<1x8x128xf32>
    %48 = vector.shape_cast %47 : vector<1x8x128xf32> to vector<8x128xf32>
    %49 = vector.shape_cast %46 : vector<8x128xf32> to vector<1x8x128xf32>
    tpu.vector_store %arg11[%c0_29, %c0_30, %c0_31], %49 {strides = array<i32>} : memref<1x8x128xf32, #tpu.memory_space<vmem>>, vector<1x8x128xf32>,
    return
  }
  func.func @transform_0(%arg0: i32) -> (i32, i32, i32) {
    %c0_i32 = arith.constant 0 : i32
    %c0_i32_0 = arith.constant 0 : i32
    %c0_i32_1 = arith.constant 0 : i32
    return %arg0, %c0_i32, %c0_i32_0 : i32, i32, i32
  }
  func.func @transform_1(%arg0: i32) -> (i32, i32) {
    %c0_i32 = arith.constant 0 : i32
    %c0_i32_0 = arith.constant 0 : i32
    %c0_i32_1 = arith.constant 0 : i32
    return %c0_i32, %c0_i32_0 : i32, i32
  }
  func.func @transform_2(%arg0: i32) -> (i32, i32) {
    %c0_i32 = arith.constant 0 : i32
    %c0_i32_0 = arith.constant 0 : i32
    %c0_i32_1 = arith.constant 0 : i32
    return %c0_i32, %c0_i32_0 : i32, i32
  }
  func.func @transform_3(%arg0: i32) -> (i32, i32) {
    %c0_i32 = arith.constant 0 : i32
    %c0_i32_0 = arith.constant 0 : i32
    %c0_i32_1 = arith.constant 0 : i32
    return %c0_i32, %c0_i32_0 : i32, i32
  }
  func.func @transform_4(%arg0: i32) -> (i32, i32) {
    %c0_i32 = arith.constant 0 : i32
    %c0_i32_0 = arith.constant 0 : i32
    %c0_i32_1 = arith.constant 0 : i32
    return %c0_i32, %c0_i32_0 : i32, i32
  }
  func.func @transform_5(%arg0: i32) -> (i32, i32) {
    %c0_i32 = arith.constant 0 : i32
    %c0_i32_0 = arith.constant 0 : i32
    %c0_i32_1 = arith.constant 0 : i32
    return %c0_i32, %c0_i32_0 : i32, i32
  }
  func.func @transform_6(%arg0: i32) -> (i32, i32) {
    %c0_i32 = arith.constant 0 : i32
    %c0_i32_0 = arith.constant 0 : i32
    %c0_i32_1 = arith.constant 0 : i32
    return %c0_i32, %c0_i32_0 : i32, i32
  }
  func.func @transform_7(%arg0: i32) -> (i32, i32) {
    %c0_i32 = arith.constant 0 : i32
    %c0_i32_0 = arith.constant 0 : i32
    %c0_i32_1 = arith.constant 0 : i32
    return %c0_i32, %c0_i32_0 : i32, i32
  }
  func.func @transform_8(%arg0: i32) -> (i32, i32) {
    %c0_i32 = arith.constant 0 : i32
    %c0_i32_0 = arith.constant 0 : i32
    %c0_i32_1 = arith.constant 0 : i32
    return %c0_i32, %c0_i32_0 : i32, i32
  }
  func.func @transform_9(%arg0: i32) -> (i32, i32, i32) {
    %c0_i32 = arith.constant 0 : i32
    %c0_i32_0 = arith.constant 0 : i32
    %c0_i32_1 = arith.constant 0 : i32
    return %arg0, %c0_i32, %c0_i32_0 : i32, i32, i32
  }
  func.func @transform_10(%arg0: i32) -> (i32, i32, i32) {
    %c0_i32 = arith.constant 0 : i32
    %c0_i32_0 = arith.constant 0 : i32
    %c0_i32_1 = arith.constant 0 : i32
    return %arg0, %c0_i32, %c0_i32_0 : i32, i32, i32
  }
}

module attributes {stable_mosaic.version = 11 : i64} {
  func.func @_roi_head_kernel(%arg0: i32, %arg1: memref<16x256xbf16, #tpu.memory_space<vmem>>, %arg2: memref<256x32xbf16, #tpu.memory_space<vmem>>, %arg3: memref<1x32xf32, #tpu.memory_space<vmem>>, %arg4: memref<32x32xbf16, #tpu.memory_space<vmem>>, %arg5: memref<1x32xf32, #tpu.memory_space<vmem>>, %arg6: memref<32x128xbf16, #tpu.memory_space<vmem>>, %arg7: memref<1x128xf32, #tpu.memory_space<vmem>>, %arg8: memref<16x128xf32, #tpu.memory_space<vmem>>) attributes {dimension_semantics = [#tpu.dimension_semantics<arbitrary>], iteration_bounds = array<i64: 1>, scalar_prefetch = 0 : i64, scratch_operands = 0 : i64, tpu.core_type = #tpu.core_type<tc>, window_params = [{pipeline_mode = #tpu.pipeline_mode<synchronous>, transform_indices = @transform_0, window_bounds = array<i64: 16, 256>}, {pipeline_mode = #tpu.pipeline_mode<synchronous>, transform_indices = @transform_1, window_bounds = array<i64: 256, 32>}, {pipeline_mode = #tpu.pipeline_mode<synchronous>, transform_indices = @transform_2, window_bounds = array<i64: 1, 32>}, {pipeline_mode = #tpu.pipeline_mode<synchronous>, transform_indices = @transform_3, window_bounds = array<i64: 32, 32>}, {pipeline_mode = #tpu.pipeline_mode<synchronous>, transform_indices = @transform_4, window_bounds = array<i64: 1, 32>}, {pipeline_mode = #tpu.pipeline_mode<synchronous>, transform_indices = @transform_5, window_bounds = array<i64: 32, 128>}, {pipeline_mode = #tpu.pipeline_mode<synchronous>, transform_indices = @transform_6, window_bounds = array<i64: 1, 128>}, {pipeline_mode = #tpu.pipeline_mode<synchronous>, transform_indices = @transform_7, window_bounds = array<i64: 16, 128>}]} {
    %c0 = arith.constant 0 : index
    %c0_0 = arith.constant 0 : index
    %0 = vector.load %arg1[%c0, %c0_0] : memref<16x256xbf16, #tpu.memory_space<vmem>>, vector<16x256xbf16>
    %c0_1 = arith.constant 0 : index
    %c0_2 = arith.constant 0 : index
    %1 = vector.load %arg2[%c0_1, %c0_2] : memref<256x32xbf16, #tpu.memory_space<vmem>>, vector<256x32xbf16>
    %cst = arith.constant dense<0.000000e+00> : vector<16x32xf32>
    %2 = tpu.matmul %0, %1, %cst {dimension_numbers = #tpu.dot_dimension_numbers<[1], [0], [0], [1], [0, 0, 1, 1], [], []>} : vector<16x256xbf16>, vector<256x32xbf16>, vector<16x32xf32> -> vector<16x32xf32>
    %c0_3 = arith.constant 0 : index
    %c0_4 = arith.constant 0 : index
    %3 = vector.load %arg3[%c0_3, %c0_4] : memref<1x32xf32, #tpu.memory_space<vmem>>, vector<1x32xf32>
    %4 = vector.broadcast %3 : vector<1x32xf32> to vector<16x32xf32>
    %5 = arith.addf %2, %4 : vector<16x32xf32>
    %cst_5 = arith.constant 0.000000e+00 : f32
    %6 = vector.broadcast %cst_5 : f32 to vector<16x32xf32>
    %7 = arith.maximumf %5, %6 : vector<16x32xf32>
    %8 = arith.truncf %7 : vector<16x32xf32> to vector<16x32xbf16>
    %c0_6 = arith.constant 0 : index
    %c0_7 = arith.constant 0 : index
    %9 = vector.load %arg4[%c0_6, %c0_7] : memref<32x32xbf16, #tpu.memory_space<vmem>>, vector<32x32xbf16>
    %cst_8 = arith.constant dense<0.000000e+00> : vector<16x32xf32>
    %10 = tpu.matmul %8, %9, %cst_8 {dimension_numbers = #tpu.dot_dimension_numbers<[1], [0], [0], [1], [0, 0, 1, 1], [], []>} : vector<16x32xbf16>, vector<32x32xbf16>, vector<16x32xf32> -> vector<16x32xf32>
    %c0_9 = arith.constant 0 : index
    %c0_10 = arith.constant 0 : index
    %11 = vector.load %arg5[%c0_9, %c0_10] : memref<1x32xf32, #tpu.memory_space<vmem>>, vector<1x32xf32>
    %12 = vector.broadcast %11 : vector<1x32xf32> to vector<16x32xf32>
    %13 = arith.addf %10, %12 : vector<16x32xf32>
    %cst_11 = arith.constant 0.000000e+00 : f32
    %14 = vector.broadcast %cst_11 : f32 to vector<16x32xf32>
    %15 = arith.maximumf %13, %14 : vector<16x32xf32>
    %16 = arith.truncf %15 : vector<16x32xf32> to vector<16x32xbf16>
    %c0_12 = arith.constant 0 : index
    %c0_13 = arith.constant 0 : index
    %17 = vector.load %arg6[%c0_12, %c0_13] : memref<32x128xbf16, #tpu.memory_space<vmem>>, vector<32x128xbf16>
    %cst_14 = arith.constant dense<0.000000e+00> : vector<16x128xf32>
    %18 = tpu.matmul %16, %17, %cst_14 {dimension_numbers = #tpu.dot_dimension_numbers<[1], [0], [0], [1], [0, 0, 1, 1], [], []>} : vector<16x32xbf16>, vector<32x128xbf16>, vector<16x128xf32> -> vector<16x128xf32>
    %c0_15 = arith.constant 0 : index
    %c0_16 = arith.constant 0 : index
    %19 = vector.load %arg7[%c0_15, %c0_16] : memref<1x128xf32, #tpu.memory_space<vmem>>, vector<1x128xf32>
    %20 = vector.broadcast %19 : vector<1x128xf32> to vector<16x128xf32>
    %21 = arith.addf %18, %20 : vector<16x128xf32>
    %c0_17 = arith.constant 0 : index
    %c0_18 = arith.constant 0 : index
    %22 = vector.load %arg8[%c0_17, %c0_18] : memref<16x128xf32, #tpu.memory_space<vmem>>, vector<16x128xf32>
    tpu.vector_store %arg8[%c0_17, %c0_18], %21 {strides = array<i32>} : memref<16x128xf32, #tpu.memory_space<vmem>>, vector<16x128xf32>,
    return
  }
  func.func @transform_0(%arg0: i32) -> (i32, i32) {
    %c0_i32 = arith.constant 0 : i32
    %c0_i32_0 = arith.constant 0 : i32
    %c0_i32_1 = arith.constant 0 : i32
    return %c0_i32, %c0_i32_0 : i32, i32
  }
  func.func @transform_1(%arg0: i32) -> (i32, i32) {
    %c0_i32 = arith.constant 0 : i32
    %c0_i32_0 = arith.constant 0 : i32
    %c0_i32_1 = arith.constant 0 : i32
    return %c0_i32, %c0_i32_0 : i32, i32
  }
  func.func @transform_2(%arg0: i32) -> (i32, i32) {
    %c0_i32 = arith.constant 0 : i32
    %c0_i32_0 = arith.constant 0 : i32
    %c0_i32_1 = arith.constant 0 : i32
    return %c0_i32, %c0_i32_0 : i32, i32
  }
  func.func @transform_3(%arg0: i32) -> (i32, i32) {
    %c0_i32 = arith.constant 0 : i32
    %c0_i32_0 = arith.constant 0 : i32
    %c0_i32_1 = arith.constant 0 : i32
    return %c0_i32, %c0_i32_0 : i32, i32
  }
  func.func @transform_4(%arg0: i32) -> (i32, i32) {
    %c0_i32 = arith.constant 0 : i32
    %c0_i32_0 = arith.constant 0 : i32
    %c0_i32_1 = arith.constant 0 : i32
    return %c0_i32, %c0_i32_0 : i32, i32
  }
  func.func @transform_5(%arg0: i32) -> (i32, i32) {
    %c0_i32 = arith.constant 0 : i32
    %c0_i32_0 = arith.constant 0 : i32
    %c0_i32_1 = arith.constant 0 : i32
    return %c0_i32, %c0_i32_0 : i32, i32
  }
  func.func @transform_6(%arg0: i32) -> (i32, i32) {
    %c0_i32 = arith.constant 0 : i32
    %c0_i32_0 = arith.constant 0 : i32
    %c0_i32_1 = arith.constant 0 : i32
    return %c0_i32, %c0_i32_0 : i32, i32
  }
  func.func @transform_7(%arg0: i32) -> (i32, i32) {
    %c0_i32 = arith.constant 0 : i32
    %c0_i32_0 = arith.constant 0 : i32
    %c0_i32_1 = arith.constant 0 : i32
    return %c0_i32, %c0_i32_0 : i32, i32
  }
}

</mosaic_0001>

<llo_original>
// kernel: generalized_rcnn_forward.2
$region0: #{generalized_rcnn_forward.2}
  #allocation0 [shape = 'u32[]', space=smem, size = 0x4, offset = 0x4, fixed_abs, tag = 'smem constant byte address 0x4 - core index']
  #allocation1 [shape = 'u32[72,128]{1,0:T(1,128)}', space=vmem, size = 0x9000, scoped, tag = 'internal scratch']
  %s0 = inlined_call_operand.vmem [shape: bf16[2,16,144], index: 0, kind: input, shape index: {}]
  %s1 = inlined_call_operand.vmem [shape: bf16[144,256], index: 1, kind: input, shape index: {}]
  %s2 = inlined_call_operand.vmem [shape: f32[1,256], index: 2, kind: input, shape index: {}]
  %s3 = inlined_call_operand.vmem [shape: bf16[768,128], index: 3, kind: input, shape index: {}]
  %s4 = inlined_call_operand.vmem [shape: f32[1,128], index: 4, kind: input, shape index: {}]
  %s5 = inlined_call_operand.vmem [shape: bf16[384,128], index: 5, kind: input, shape index: {}]
  %s6 = inlined_call_operand.vmem [shape: f32[1,128], index: 6, kind: input, shape index: {}]
  %s7 = inlined_call_operand.vmem [shape: bf16[128,128], index: 7, kind: input, shape index: {}]
  %s8 = inlined_call_operand.vmem [shape: f32[1,128], index: 8, kind: input, shape index: {}]
  %s9 = inlined_call_operand.vmem [shape: bf16[2,8,128], index: 9, kind: output, shape index: {0}]
  %s10 = inlined_call_operand.vmem [shape: f32[2,8,128], index: 10, kind: output, shape index: {1}]
  %11 = xla_tuple %s9, %s10
  %s12 = sld [smem:[#allocation0]]
  $region77: #{generalized_rcnn_forward.2} parent=0
    _
  %s14 = ssub.s32 1, %s12
  %s15 = scalar_select 0, %s14, %s12
  loop: start=0, step=1, limit=4
  $region2: #{generalized_rcnn_forward.2} parent=0 // loop_pre_header
    _
  $region3: #{generalized_rcnn_forward.2} parent=0 // loop_header
    %s17 = sphi 0, %s21
    %p18 = scmp.ge.s32.totalorder %s17, 4
    %s27 = sphi 0, %s29
    %s30 = sphi 0, %s27
    %s31 = sphi 0, %s30
    %s47 = sphi 0, %s31
    %s51 = sphi 0, %s51
    %s53 = sphi 0, %s51
    %s54 = sphi 0, %s53
    %s68 = sphi 0, %s54
    %s72 = sphi 0, %s72
    %s74 = sphi 0, %s72
    %s75 = sphi 0, %s74
    %s89 = sphi 0, %s75
    %s93 = sphi 0, %s93
    %s95 = sphi 0, %s93
    %s96 = sphi 0, %s95
    %s110 = sphi 0, %s96
    %s114 = sphi 0, %s114
    %s116 = sphi 0, %s114
    %s117 = sphi 0, %s116
    %s131 = sphi 0, %s117
    %s135 = sphi 0, %s135
    %s137 = sphi 0, %s135
    %s138 = sphi 0, %s137
    %s152 = sphi 0, %s138
    %s156 = sphi 0, %s156
    %s158 = sphi 0, %s156
    %s159 = sphi 0, %s158
    %s173 = sphi 0, %s159
    %s177 = sphi 0, %s177
    %s179 = sphi 0, %s177
    %s180 = sphi 0, %s179
    %s194 = sphi 0, %s180
    %s198 = sphi 0, %s198
    %s200 = sphi 0, %s198
    %s201 = sphi 0, %s200
    %s215 = sphi 0, %s201
    %s221 = sphi 0, %s223
    %s224 = sphi 0, %s221
    %s225 = sphi 0, %s224
    %s241 = sphi 0, %s225
    %s247 = sphi 0, %s249
    %s250 = sphi 0, %s247
    %s251 = sphi 0, %s250
    %s267 = sphi 0, %s251
  $region4: #{generalized_rcnn_forward.2} parent=0 // loop_header_branch
    %20 = sbr.rel (%p18) target = $region8
  $region5: #{generalized_rcnn_forward.2} parent=0 // loop_body
    %s22 = ssub.s32 %s17, 1
    %s23 = ssub.s32 %s17, 2
    %s24 = sadd.s32 %s17, 1
    %s25 = ssub.s32 %s17, %s24
    %p26 = scmp.eq.s32.totalorder %s25, 0
    %s28 = sadd.s32 %s27, 1
    %s29 = scalar_select %p26, %s27, %s28
    %p32 = pneg %p26
    %p33 = scmp.eq.s32.totalorder %s17, 1
    %p34 = por %p32, %p33
    %p35 = scmp.ne.s32.totalorder %s27, %s30
    %p36 = scmp.eq.s32.totalorder %s17, 0
    %p37 = por %p35, %p36
    %p38 = scmp.ne.s32.totalorder %s27, %s30
    %p39 = scmp.eq.s32.totalorder %s22, 1
    %p40 = por %p38, %p39
    %p41 = scmp.ne.s32.totalorder %s30, %s31
    %p42 = scmp.eq.s32.totalorder %s22, 0
    %p43 = por %p41, %p42
    %p44 = scmp.ne.s32.totalorder %s30, %s31
    %p45 = scmp.eq.s32.totalorder %s23, 1
    %p46 = por %p44, %p45
    %p48 = scmp.ne.s32.totalorder %s31, %s47
    %p49 = scmp.eq.s32.totalorder %s23, 0
    %p50 = por %p48, %p49
    %s52 = sadd.s32 %s51, 1
    %p55 = scmp.eq.s32.totalorder %s17, 1
    %p56 = scmp.ne.s32.totalorder %s51, %s53
    %p57 = scmp.eq.s32.totalorder %s17, 0
    %p58 = por %p56, %p57
    %p59 = scmp.ne.s32.totalorder %s51, %s53
    %p60 = scmp.eq.s32.totalorder %s22, 1
    %p61 = por %p59, %p60
    %p62 = scmp.ne.s32.totalorder %s53, %s54
    %p63 = scmp.eq.s32.totalorder %s22, 0
    %p64 = por %p62, %p63
    %p65 = scmp.ne.s32.totalorder %s53, %s54
    %p66 = scmp.eq.s32.totalorder %s23, 1
    %p67 = por %p65, %p66
    %p69 = scmp.ne.s32.totalorder %s54, %s68
    %p70 = scmp.eq.s32.totalorder %s23, 0
    %p71 = por %p69, %p70
    %s73 = sadd.s32 %s72, 1
    %p76 = scmp.eq.s32.totalorder %s17, 1
    %p77 = scmp.ne.s32.totalorder %s72, %s74
    %p78 = scmp.eq.s32.totalorder %s17, 0
    %p79 = por %p77, %p78
    %p80 = scmp.ne.s32.totalorder %s72, %s74
    %p81 = scmp.eq.s32.totalorder %s22, 1
    %p82 = por %p80, %p81
    %p83 = scmp.ne.s32.totalorder %s74, %s75
    %p84 = scmp.eq.s32.totalorder %s22, 0
    %p85 = por %p83, %p84
    %p86 = scmp.ne.s32.totalorder %s74, %s75
    %p87 = scmp.eq.s32.totalorder %s23, 1
    %p88 = por %p86, %p87
    %p90 = scmp.ne.s32.totalorder %s75, %s89
    %p91 = scmp.eq.s32.totalorder %s23, 0
    %p92 = por %p90, %p91
    %s94 = sadd.s32 %s93, 1
    %p97 = scmp.eq.s32.totalorder %s17, 1
    %p98 = scmp.ne.s32.totalorder %s93, %s95
    %p99 = scmp.eq.s32.totalorder %s17, 0
    %p100 = por %p98, %p99
    %p101 = scmp.ne.s32.totalorder %s93, %s95
    %p102 = scmp.eq.s32.totalorder %s22, 1
    %p103 = por %p101, %p102
    %p104 = scmp.ne.s32.totalorder %s95, %s96
    %p105 = scmp.eq.s32.totalorder %s22, 0
    %p106 = por %p104, %p105
    %p107 = scmp.ne.s32.totalorder %s95, %s96
    %p108 = scmp.eq.s32.totalorder %s23, 1
    %p109 = por %p107, %p108
    %p111 = scmp.ne.s32.totalorder %s96, %s110
    %p112 = scmp.eq.s32.totalorder %s23, 0
    %p113 = por %p111, %p112
    %s115 = sadd.s32 %s114, 1
    %p118 = scmp.eq.s32.totalorder %s17, 1
    %p119 = scmp.ne.s32.totalorder %s114, %s116
    %p120 = scmp.eq.s32.totalorder %s17, 0
    %p121 = por %p119, %p120
    %p122 = scmp.ne.s32.totalorder %s114, %s116
    %p123 = scmp.eq.s32.totalorder %s22, 1
    %p124 = por %p122, %p123
    %p125 = scmp.ne.s32.totalorder %s116, %s117
    %p126 = scmp.eq.s32.totalorder %s22, 0
    %p127 = por %p125, %p126
    %p128 = scmp.ne.s32.totalorder %s116, %s117
    %p129 = scmp.eq.s32.totalorder %s23, 1
    %p130 = por %p128, %p129
    %p132 = scmp.ne.s32.totalorder %s117, %s131
    %p133 = scmp.eq.s32.totalorder %s23, 0
    %p134 = por %p132, %p133
    %s136 = sadd.s32 %s135, 1
    %p139 = scmp.eq.s32.totalorder %s17, 1
    %p140 = scmp.ne.s32.totalorder %s135, %s137
    %p141 = scmp.eq.s32.totalorder %s17, 0
    %p142 = por %p140, %p141
    %p143 = scmp.ne.s32.totalorder %s135, %s137
    %p144 = scmp.eq.s32.totalorder %s22, 1
    %p145 = por %p143, %p144
    %p146 = scmp.ne.s32.totalorder %s137, %s138
    %p147 = scmp.eq.s32.totalorder %s22, 0
    %p148 = por %p146, %p147
    %p149 = scmp.ne.s32.totalorder %s137, %s138
    %p150 = scmp.eq.s32.totalorder %s23, 1
    %p151 = por %p149, %p150
    %p153 = scmp.ne.s32.totalorder %s138, %s152
    %p154 = scmp.eq.s32.totalorder %s23, 0
    %p155 = por %p153, %p154
    %s157 = sadd.s32 %s156, 1
    %p160 = scmp.eq.s32.totalorder %s17, 1
    %p161 = scmp.ne.s32.totalorder %s156, %s158
    %p162 = scmp.eq.s32.totalorder %s17, 0
    %p163 = por %p161, %p162
    %p164 = scmp.ne.s32.totalorder %s156, %s158
    %p165 = scmp.eq.s32.totalorder %s22, 1
    %p166 = por %p164, %p165
    %p167 = scmp.ne.s32.totalorder %s158, %s159
    %p168 = scmp.eq.s32.totalorder %s22, 0
    %p169 = por %p167, %p168
    %p170 = scmp.ne.s32.totalorder %s158, %s159
    %p171 = scmp.eq.s32.totalorder %s23, 1
    %p172 = por %p170, %p171
    %p174 = scmp.ne.s32.totalorder %s159, %s173
    %p175 = scmp.eq.s32.totalorder %s23, 0
    %p176 = por %p174, %p175
    %s178 = sadd.s32 %s177, 1
    %p181 = scmp.eq.s32.totalorder %s17, 1
    %p182 = scmp.ne.s32.totalorder %s177, %s179
    %p183 = scmp.eq.s32.totalorder %s17, 0
    %p184 = por %p182, %p183
    %p185 = scmp.ne.s32.totalorder %s177, %s179
    %p186 = scmp.eq.s32.totalorder %s22, 1
    %p187 = por %p185, %p186
    %p188 = scmp.ne.s32.totalorder %s179, %s180
    %p189 = scmp.eq.s32.totalorder %s22, 0
    %p190 = por %p188, %p189
    %p191 = scmp.ne.s32.totalorder %s179, %s180
    %p192 = scmp.eq.s32.totalorder %s23, 1
    %p193 = por %p191, %p192
    %p195 = scmp.ne.s32.totalorder %s180, %s194
    %p196 = scmp.eq.s32.totalorder %s23, 0
    %p197 = por %p195, %p196
    %s199 = sadd.s32 %s198, 1
    %p202 = scmp.eq.s32.totalorder %s17, 1
    %p203 = scmp.ne.s32.totalorder %s198, %s200
    %p204 = scmp.eq.s32.totalorder %s17, 0
    %p205 = por %p203, %p204
    %p206 = scmp.ne.s32.totalorder %s198, %s200
    %p207 = scmp.eq.s32.totalorder %s22, 1
    %p208 = por %p206, %p207
    %p209 = scmp.ne.s32.totalorder %s200, %s201
    %p210 = scmp.eq.s32.totalorder %s22, 0
    %p211 = por %p209, %p210
    %p212 = scmp.ne.s32.totalorder %s200, %s201
    %p213 = scmp.eq.s32.totalorder %s23, 1
    %p214 = por %p212, %p213
    %p216 = scmp.ne.s32.totalorder %s201, %s215
    %p217 = scmp.eq.s32.totalorder %s23, 0
    %p218 = por %p216, %p217
    %s219 = ssub.s32 %s17, %s24
    %p220 = scmp.eq.s32.totalorder %s219, 0
    %s222 = sadd.s32 %s221, 1
    %s223 = scalar_select %p220, %s221, %s222
    %p226 = pneg %p220
    %p227 = scmp.eq.s32.totalorder %s17, 1
    %p228 = por %p226, %p227
    %p229 = scmp.ne.s32.totalorder %s221, %s224
    %p230 = scmp.eq.s32.totalorder %s17, 0
    %p231 = por %p229, %p230
    %p232 = scmp.ne.s32.totalorder %s221, %s224
    %p233 = scmp.eq.s32.totalorder %s22, 1
    %p234 = por %p232, %p233
    %p235 = scmp.ne.s32.totalorder %s224, %s225
    %p236 = scmp.eq.s32.totalorder %s22, 0
    %p237 = por %p235, %p236
    %p238 = scmp.ne.s32.totalorder %s224, %s225
    %p239 = scmp.eq.s32.totalorder %s23, 1
    %p240 = por %p238, %p239
    %p242 = scmp.ne.s32.totalorder %s225, %s241
    %p243 = scmp.eq.s32.totalorder %s23, 0
    %p244 = por %p242, %p243
    %s245 = ssub.s32 %s17, %s24
    %p246 = scmp.eq.s32.totalorder %s245, 0
    %s248 = sadd.s32 %s247, 1
    %s249 = scalar_select %p246, %s247, %s248
    %p252 = pneg %p246
    %p253 = scmp.eq.s32.totalorder %s17, 1
    %p254 = por %p252, %p253
    %p255 = scmp.ne.s32.totalorder %s247, %s250
    %p256 = scmp.eq.s32.totalorder %s17, 0
    %p257 = por %p255, %p256
    %p258 = scmp.ne.s32.totalorder %s247, %s250
    %p259 = scmp.eq.s32.totalorder %s22, 1
    %p260 = por %p258, %p259
    %p261 = scmp.ne.s32.totalorder %s250, %s251
    %p262 = scmp.eq.s32.totalorder %s22, 0
    %p263 = por %p261, %p262
    %p264 = scmp.ne.s32.totalorder %s250, %s251
    %p265 = scmp.eq.s32.totalorder %s23, 1
    %p266 = por %p264, %p265
    %p268 = scmp.ne.s32.totalorder %s251, %s267
    %p269 = scmp.eq.s32.totalorder %s23, 0
    %p270 = por %p268, %p269
    %p271 = scmp.le.s32.totalorder 1, %s17
    %p272 = scmp.lt.s32.totalorder %s17, 3
    %p273 = pnand %p271, %p272
    %p274 = pneg %p273
    // Predicated region
    $region9: #{generalized_rcnn_forward.2} parent=5 // pred_check
      _
    $region10: #{generalized_rcnn_forward.2} parent=5 // pred_check_branch
      %276 = sbr.rel (%p273) target = $region12
    $region11: #{generalized_rcnn_forward.2} parent=5 // pred_region
      %s277 = ssub.s32 %s17, 1
      // Predicated region
      $region13: #{generalized_rcnn_forward.2} parent=11 // pred_check
        %p278 = pneg %p64
      $region14: #{generalized_rcnn_forward.2} parent=11 // pred_check_branch
        %280 = sbr.rel (%p278) target = $region16
      $region15: #{generalized_rcnn_forward.2} parent=11 // pred_region
        _
      $region16: #{generalized_rcnn_forward.2} parent=11 // pred_fallthru
        _
      // Predicated region
      $region17: #{generalized_rcnn_forward.2} parent=11 // pred_check
        %p281 = pneg %p85
      $region18: #{generalized_rcnn_forward.2} parent=11 // pred_check_branch
        %283 = sbr.rel (%p281) target = $region20
      $region19: #{generalized_rcnn_forward.2} parent=11 // pred_region
        _
      $region20: #{generalized_rcnn_forward.2} parent=11 // pred_fallthru
        _
      // Predicated region
      $region21: #{generalized_rcnn_forward.2} parent=11 // pred_check
        %p284 = pneg %p106
      $region22: #{generalized_rcnn_forward.2} parent=11 // pred_check_branch
        %286 = sbr.rel (%p284) target = $region24
      $region23: #{generalized_rcnn_forward.2} parent=11 // pred_region
        _
      $region24: #{generalized_rcnn_forward.2} parent=11 // pred_fallthru
        _
      // Predicated region
      $region25: #{generalized_rcnn_forward.2} parent=11 // pred_check
        %p287 = pneg %p127
      $region26: #{generalized_rcnn_forward.2} parent=11 // pred_check_branch
        %289 = sbr.rel (%p287) target = $region28
      $region27: #{generalized_rcnn_forward.2} parent=11 // pred_region
        _
      $region28: #{generalized_rcnn_forward.2} parent=11 // pred_fallthru
        _
      // Predicated region
      $region29: #{generalized_rcnn_forward.2} parent=11 // pred_check
        %p290 = pneg %p148
      $region30: #{generalized_rcnn_forward.2} parent=11 // pred_check_branch
        %292 = sbr.rel (%p290) target = $region32
      $region31: #{generalized_rcnn_forward.2} parent=11 // pred_region
        _
      $region32: #{generalized_rcnn_forward.2} parent=11 // pred_fallthru
        _
      // Predicated region
      $region33: #{generalized_rcnn_forward.2} parent=11 // pred_check
        %p293 = pneg %p169
      $region34: #{generalized_rcnn_forward.2} parent=11 // pred_check_branch
        %295 = sbr.rel (%p293) target = $region36
      $region35: #{generalized_rcnn_forward.2} parent=11 // pred_region
        _
      $region36: #{generalized_rcnn_forward.2} parent=11 // pred_fallthru
        _
      // Predicated region
      $region37: #{generalized_rcnn_forward.2} parent=11 // pred_check
        %p296 = pneg %p190
      $region38: #{generalized_rcnn_forward.2} parent=11 // pred_check_branch
        %298 = sbr.rel (%p296) target = $region40
      $region39: #{generalized_rcnn_forward.2} parent=11 // pred_region
        _
      $region40: #{generalized_rcnn_forward.2} parent=11 // pred_fallthru
        _
      // Predicated region
      $region41: #{generalized_rcnn_forward.2} parent=11 // pred_check
        %p299 = pneg %p211
      $region42: #{generalized_rcnn_forward.2} parent=11 // pred_check_branch
        %301 = sbr.rel (%p299) target = $region44
      $region43: #{generalized_rcnn_forward.2} parent=11 // pred_region
        _
      $region44: #{generalized_rcnn_forward.2} parent=11 // pred_fallthru
        _
    $region12: #{generalized_rcnn_forward.2} parent=5 // pred_fallthru
      _
    %p302 = scmp.lt.s32.totalorder %s17, 2
    // Predicated region
    $region45: #{generalized_rcnn_forward.2} parent=5 // pred_check
      %p303 = pneg %p302
    $region46: #{generalized_rcnn_forward.2} parent=5 // pred_check_branch
      %305 = sbr.rel (%p303) target = $region48
    $region47: #{generalized_rcnn_forward.2} parent=5 // pred_region
      // Predicated region
      $region49: #{generalized_rcnn_forward.2} parent=47 // pred_check
        %p306 = pneg %p37
      $region50: #{generalized_rcnn_forward.2} parent=47 // pred_check_branch
        %308 = sbr.rel (%p306) target = $region52
      $region51: #{generalized_rcnn_forward.2} parent=47 // pred_region
        %p309 = scmp.lt.s32.totalorder %s17, 1
        %s310 = scalar_select %p309, %s17, 1
        %s311 = smul.addr %s310, 4
        %s312 = smul.addr %s311, 4
        %s313 = scalar_lea.vmem %s0, %s312
      $region52: #{generalized_rcnn_forward.2} parent=47 // pred_fallthru
        _
    $region48: #{generalized_rcnn_forward.2} parent=5 // pred_fallthru
      _
    %p314 = scmp.le.s32.totalorder 1, %s17
    %p315 = scmp.lt.s32.totalorder %s17, 3
    %p316 = pnand %p314, %p315
    %p317 = pneg %p316
    // Predicated region
    $region53: #{generalized_rcnn_forward.2} parent=5 // pred_check
      _
    $region54: #{generalized_rcnn_forward.2} parent=5 // pred_check_branch
      %319 = sbr.rel (%p316) target = $region56
    $region55: #{generalized_rcnn_forward.2} parent=5 // pred_region
      %s320 = ssub.s32 %s17, 1
      %p321 = scmp.lt.s32.totalorder %s22, 1
      %s322 = scalar_select %p321, %s22, 1
      %s323 = smul.addr %s322, 4
      %s324 = smul.addr %s323, 4
      %s325 = scalar_lea.vmem %s0, %s324
      %p326 = pneg %p43
      %p327 = pneg %p40
      %p328 = pneg %p64
      %p329 = pneg %p61
      %p330 = pneg %p85
      %p331 = pneg %p82
      %p332 = pneg %p106
      %p333 = pneg %p103
      %p334 = pneg %p127
      %p335 = pneg %p124
      %p336 = pneg %p148
      %p337 = pneg %p145
      %p338 = pneg %p169
      %p339 = pneg %p166
      %p340 = pneg %p190
      %p341 = pneg %p187
      %p342 = pneg %p211
      %p343 = pneg %p208
      %p344 = pneg %p237
      %p345 = pneg %p234
      %p346 = scmp.lt.s32.totalorder %s22, 1
      %s347 = scalar_select %p346, %s22, 1
      %s348 = smul.addr %s347, 4
      %s349 = scalar_lea.vmem %s9, %s348
      %p350 = pneg %p263
      %p351 = pneg %p260
      %p352 = scmp.lt.s32.totalorder %s22, 1
      %s353 = scalar_select %p352, %s22, 1
      %s354 = smul.addr %s353, 8
      %s355 = scalar_lea.vmem %s10, %s354
      %p356 = scmp.lt.s32.totalorder %s22, 1
      %s357 = scalar_select %p356, %s22, 1
      %s358 = smul.addr %s357, 4
      %s359 = smul.addr %s358, 4
      %s360 = scalar_lea.vmem %s0, %s359
      %p361 = scmp.lt.s32.totalorder %s22, 1
      %s362 = scalar_select %p361, %s22, 1
      %s363 = smul.addr %s362, 4
      %s364 = scalar_lea.vmem %s9, %s363
      %p365 = scmp.lt.s32.totalorder %s22, 1
      %s366 = scalar_select %p365, %s22, 1
      %s367 = smul.addr %s366, 8
      %s368 = scalar_lea.vmem %s10, %s367
      %v370 = vld [vmem:[%s360] sm:$0xff]
      %v371 = vld [vmem:[%s360 + $0x8] sm:$0xff]
      %v372 = vld [vmem:[%s1] sm:$0xff]
      %v373 = vld [vmem:[%s1 + $0x8] sm:$0xff]
      %v374 = vld [vmem:[%s1 + $0x10] sm:$0xff]
      %v375 = vld [vmem:[%s1 + $0x18] sm:$0xff]
      %v376 = vld [vmem:[%s1 + $0x20] sm:$0xff]
      %v377 = vld [vmem:[%s1 + $0x28] sm:$0xff]
      %v378 = vld [vmem:[%s1 + $0x30] sm:$0xff]
      %v379 = vld [vmem:[%s1 + $0x38] sm:$0xff]
      %v380 = vld [vmem:[%s1 + $0x40] sm:$0xff]
      %v381 = vld [vmem:[%s1 + $0x48] sm:$0xff]
      %v382 = vld [vmem:[%s1 + $0x50] sm:$0xff]
      %v383 = vld [vmem:[%s1 + $0x58] sm:$0xff]
      %v384 = vld [vmem:[%s1 + $0x60] sm:$0xff]
      %v385 = vld [vmem:[%s1 + $0x68] sm:$0xff]
      %v386 = vld [vmem:[%s1 + $0x70] sm:$0xff]
      %v387 = vld [vmem:[%s1 + $0x78] sm:$0xff]
      %v388 = vld [vmem:[%s1 + $0x80] sm:$0xff]
      %v389 = vld [vmem:[%s1 + $0x88] sm:$0xff]
      %v390 = vld [vmem:[%s2] sm:$0x3]
      %v392 = vperm.slane %v390, 0
      %v393 = vperm.slane %v390, 1
      %v398 = vunpack.c.l.b16 %v370
      %v399 = vunpack.c.h.b16 %v370
      %v400 = vunpack.c.l.b16 %v371
      %v401 = vunpack.c.h.b16 %v371
      %v402 = vpack.c.b16 %v400, %v398
      %v403 = vpack.c.b16 %v401, %v399
      %v423 = vunpack.c.l.b16 %v372
      %v424 = vunpack.c.h.b16 %v372
      %v425 = vunpack.c.l.b16 %v373
      %v426 = vunpack.c.h.b16 %v373
      %v427 = vunpack.c.l.b16 %v374
      %v428 = vunpack.c.h.b16 %v374
      %v429 = vunpack.c.l.b16 %v375
      %v430 = vunpack.c.h.b16 %v375
      %v431 = vunpack.c.l.b16 %v376
      %v432 = vunpack.c.h.b16 %v376
      %v433 = vunpack.c.l.b16 %v377
      %v434 = vunpack.c.h.b16 %v377
      %v435 = vunpack.c.l.b16 %v378
      %v436 = vunpack.c.h.b16 %v378
      %v437 = vunpack.c.l.b16 %v379
      %v438 = vunpack.c.h.b16 %v379
      %v439 = vunpack.c.l.b16 %v380
      %v440 = vunpack.c.h.b16 %v380
      %v441 = vunpack.c.l.b16 %v381
      %v442 = vunpack.c.h.b16 %v381
      %v443 = vunpack.c.l.b16 %v382
      %v444 = vunpack.c.h.b16 %v382
      %v445 = vunpack.c.l.b16 %v383
      %v446 = vunpack.c.h.b16 %v383
      %v447 = vunpack.c.l.b16 %v384
      %v448 = vunpack.c.h.b16 %v384
      %v449 = vunpack.c.l.b16 %v385
      %v450 = vunpack.c.h.b16 %v385
      %v451 = vunpack.c.l.b16 %v386
      %v452 = vunpack.c.h.b16 %v386
      %v453 = vunpack.c.l.b16 %v387
      %v454 = vunpack.c.h.b16 %v387
      %v455 = vunpack.c.l.b16 %v388
      %v456 = vunpack.c.h.b16 %v388
      %v457 = vunpack.c.l.b16 %v389
      %v458 = vunpack.c.h.b16 %v389
      %v459 = vpack.c.b16 %v425, %v423
      %v460 = vpack.c.b16 %v426, %v424
      %v461 = vpack.c.b16 %v429, %v427
      %v462 = vpack.c.b16 %v430, %v428
      %v463 = vpack.c.b16 %v433, %v431
      %v464 = vpack.c.b16 %v434, %v432
      %v465 = vpack.c.b16 %v437, %v435
      %v466 = vpack.c.b16 %v438, %v436
      %v467 = vpack.c.b16 %v441, %v439
      %v468 = vpack.c.b16 %v442, %v440
      %v469 = vpack.c.b16 %v445, %v443
      %v470 = vpack.c.b16 %v446, %v444
      %v471 = vpack.c.b16 %v449, %v447
      %v472 = vpack.c.b16 %v450, %v448
      %v473 = vpack.c.b16 %v453, %v451
      %v474 = vpack.c.b16 %v454, %v452
      %v475 = vpack.c.b16 %v457, %v455
      %v476 = vpack.c.b16 %v458, %v456
      %vm495 = vcmask 130048
      %v497 = vsel %vm495, %v403, 0
      %499 = vmatpush.bf16.msra.mxu0 %v473
      %500 = vmatpush.bf16.msra.mxu0 %v471
      %501 = vmatpush.bf16.msra.mxu0 %v469
      %502 = vmatpush.bf16.msra.mxu0 %v467
      %503 = vmatpush.bf16.msra.mxu0 %v465
      %504 = vmatpush.bf16.msra.mxu0 %v463
      %505 = vmatpush.bf16.msra.mxu0 %v461
      %506 = vmatpush.bf16.msra.mxu0 %v459
      %507 = vmatmul.bf16.gmra.mxu0 %v402
      %v508 = vpop.f32.mrf.mxu0
      %v509 = vadd.f32 %v392, %v508
      %v510 = vpop.f32.mrf.mxu0
      %v511 = vadd.f32 %v392, %v510
      %512 = vdwg.mxu0
      %513 = vmatpush.bf16.msra.mxu0 0
      %514 = vmatpush.bf16.msra.mxu0 0
      %515 = vmatpush.bf16.msra.mxu0 0
      %516 = vmatpush.bf16.msra.mxu0 0
      %517 = vmatpush.bf16.msra.mxu0 0
      %518 = vmatpush.bf16.msra.mxu0 0
      %519 = vmatpush.bf16.msra.mxu0 0
      %520 = vmatpush.bf16.msra.mxu0 %v475
      %521 = vmatmul.bf16.gmra.mxu0 %v497
      %v522 = vpop.f32.mrf.mxu0
      %v523 = vadd.f32 %v509, %v522
      %v524 = vpop.f32.mrf.mxu0
      %v525 = vadd.f32 %v511, %v524
      %526 = vdwg.mxu0
      %527 = vmatpush.bf16.msra.mxu0 %v474
      %528 = vmatpush.bf16.msra.mxu0 %v472
      %529 = vmatpush.bf16.msra.mxu0 %v470
      %530 = vmatpush.bf16.msra.mxu0 %v468
      %531 = vmatpush.bf16.msra.mxu0 %v466
      %532 = vmatpush.bf16.msra.mxu0 %v464
      %533 = vmatpush.bf16.msra.mxu0 %v462
      %534 = vmatpush.bf16.msra.mxu0 %v460
      %535 = vmatmul.bf16.gmra.mxu0 %v402
      %v536 = vpop.f32.mrf.mxu0
      %v537 = vadd.f32 %v393, %v536
      %v538 = vpop.f32.mrf.mxu0
      %v539 = vadd.f32 %v393, %v538
      %540 = vdwg.mxu0
      %541 = vmatpush.bf16.msra.mxu0 0
      %542 = vmatpush.bf16.msra.mxu0 0
      %543 = vmatpush.bf16.msra.mxu0 0
      %544 = vmatpush.bf16.msra.mxu0 0
      %545 = vmatpush.bf16.msra.mxu0 0
      %546 = vmatpush.bf16.msra.mxu0 0
      %547 = vmatpush.bf16.msra.mxu0 0
      %548 = vmatpush.bf16.msra.mxu0 %v476
      %549 = vmatmul.bf16.gmra.mxu0 %v497
      %v550 = vpop.f32.mrf.mxu0
      %v551 = vadd.f32 %v537, %v550
      %v552 = vpop.f32.mrf.mxu0
      %v553 = vadd.f32 %v539, %v552
      %554 = vdwg.mxu0
      %v555 = vmax.f32 %v523, 0.0
      %v556 = vmax.f32 %v551, 0.0
      %v557 = vmax.f32 %v525, 0.0
      %v558 = vmax.f32 %v553, 0.0
      %v561 = vrot.slane %v557, 7
      %v562 = vrot.slane %v558, 7
      %vm565 = vcmask 1040384
      %v566 = vsel %vm565, 0.0, %v561
      %v567 = vsel %vm565, 0.0, %v562
      %v568 = vpack.c.bf16 %v566, %v566
      %v569 = vpack.c.bf16 %v567, %v567
      %v570 = vpack.c.bf16 %v555, %v555
      %v571 = vpack.c.bf16 %v556, %v556
      %v572 = vpack.c.bf16 %v557, %v557
      %v573 = vpack.c.bf16 %v558, %v558
      %v574 = vld [vmem:[%s3] sm:$0xf]
      %v575 = vld [vmem:[%s3 + $0x4] sm:$0xf]
      %v576 = vld [vmem:[%s3 + $0x8] sm:$0xf]
      %v577 = vld [vmem:[%s3 + $0xc] sm:$0xf]
      %v578 = vld [vmem:[%s3 + $0x10] sm:$0xf]
      %v579 = vld [vmem:[%s3 + $0x14] sm:$0xf]
      %v580 = vld [vmem:[%s3 + $0x18] sm:$0xf]
      %v581 = vld [vmem:[%s3 + $0x1c] sm:$0xf]
      %v582 = vld [vmem:[%s3 + $0x20] sm:$0xf]
      %v583 = vld [vmem:[%s3 + $0x24] sm:$0xf]
      %v584 = vld [vmem:[%s3 + $0x28] sm:$0xf]
      %v585 = vld [vmem:[%s3 + $0x2c] sm:$0xf]
      %v586 = vld [vmem:[%s3 + $0x30] sm:$0xf]
      %v587 = vld [vmem:[%s3 + $0x34] sm:$0xf]
      %v588 = vld [vmem:[%s3 + $0x38] sm:$0xf]
      %v589 = vld [vmem:[%s3 + $0x3c] sm:$0xf]
      %v590 = vld [vmem:[%s3 + $0x40] sm:$0xf]
      %v591 = vld [vmem:[%s3 + $0x44] sm:$0xf]
      %v592 = vld [vmem:[%s3 + $0x48] sm:$0xf]
      %v593 = vld [vmem:[%s3 + $0x4c] sm:$0xf]
      %v594 = vld [vmem:[%s3 + $0x50] sm:$0xf]
      %v595 = vld [vmem:[%s3 + $0x54] sm:$0xf]
      %v596 = vld [vmem:[%s3 + $0x58] sm:$0xf]
      %v597 = vld [vmem:[%s3 + $0x5c] sm:$0xf]
      %v598 = vld [vmem:[%s3 + $0x60] sm:$0xf]
      %v599 = vld [vmem:[%s3 + $0x64] sm:$0xf]
      %v600 = vld [vmem:[%s3 + $0x68] sm:$0xf]
      %v601 = vld [vmem:[%s3 + $0x6c] sm:$0xf]
      %v602 = vld [vmem:[%s3 + $0x70] sm:$0xf]
      %v603 = vld [vmem:[%s3 + $0x74] sm:$0xf]
      %v604 = vld [vmem:[%s3 + $0x78] sm:$0xf]
      %v605 = vld [vmem:[%s3 + $0x7c] sm:$0xf]
      %v606 = vld [vmem:[%s3 + $0x80] sm:$0xf]
      %v607 = vld [vmem:[%s3 + $0x84] sm:$0xf]
      %v608 = vld [vmem:[%s3 + $0x88] sm:$0xf]
      %v609 = vld [vmem:[%s3 + $0x8c] sm:$0xf]
      %v610 = vld [vmem:[%s3 + $0x90] sm:$0xf]
      %v611 = vld [vmem:[%s3 + $0x94] sm:$0xf]
      %v612 = vld [vmem:[%s3 + $0x98] sm:$0xf]
      %v613 = vld [vmem:[%s3 + $0x9c] sm:$0xf]
      %v614 = vld [vmem:[%s3 + $0xa0] sm:$0xf]
      %v615 = vld [vmem:[%s3 + $0xa4] sm:$0xf]
      %v616 = vld [vmem:[%s3 + $0xa8] sm:$0xf]
      %v617 = vld [vmem:[%s3 + $0xac] sm:$0xf]
      %v618 = vld [vmem:[%s3 + $0xb0] sm:$0xf]
      %v619 = vld [vmem:[%s3 + $0xb4] sm:$0xf]
      %v620 = vld [vmem:[%s3 + $0xb8] sm:$0xf]
      %v621 = vld [vmem:[%s3 + $0xbc] sm:$0xf]
      %v622 = vld [vmem:[%s3 + $0xc0] sm:$0xf]
      %v623 = vld [vmem:[%s3 + $0xc4] sm:$0xf]
      %v624 = vld [vmem:[%s3 + $0xc8] sm:$0xf]
      %v625 = vld [vmem:[%s3 + $0xcc] sm:$0xf]
      %v626 = vld [vmem:[%s3 + $0xd0] sm:$0xf]
      %v627 = vld [vmem:[%s3 + $0xd4] sm:$0xf]
      %v628 = vld [vmem:[%s3 + $0xd8] sm:$0xf]
      %v629 = vld [vmem:[%s3 + $0xdc] sm:$0xf]
      %v630 = vld [vmem:[%s3 + $0xe0] sm:$0xf]
      %v631 = vld [vmem:[%s3 + $0xe4] sm:$0xf]
      %v632 = vld [vmem:[%s3 + $0xe8] sm:$0xf]
      %v633 = vld [vmem:[%s3 + $0xec] sm:$0xf]
      %v634 = vld [vmem:[%s3 + $0xf0] sm:$0xf]
      %v635 = vld [vmem:[%s3 + $0xf4] sm:$0xf]
      %v636 = vld [vmem:[%s3 + $0xf8] sm:$0xf]
      %v637 = vld [vmem:[%s3 + $0xfc] sm:$0xf]
      %v638 = vld [vmem:[%s3 + $0x100] sm:$0xf]
      %v639 = vld [vmem:[%s3 + $0x104] sm:$0xf]
      %v640 = vld [vmem:[%s3 + $0x108] sm:$0xf]
      %v641 = vld [vmem:[%s3 + $0x10c] sm:$0xf]
      %v642 = vld [vmem:[%s3 + $0x110] sm:$0xf]
      %v643 = vld [vmem:[%s3 + $0x114] sm:$0xf]
      %v644 = vld [vmem:[%s3 + $0x118] sm:$0xf]
      %v645 = vld [vmem:[%s3 + $0x11c] sm:$0xf]
      %v646 = vld [vmem:[%s3 + $0x120] sm:$0xf]
      %v647 = vld [vmem:[%s3 + $0x124] sm:$0xf]
      %v648 = vld [vmem:[%s3 + $0x128] sm:$0xf]
      %v649 = vld [vmem:[%s3 + $0x12c] sm:$0xf]
      %v650 = vld [vmem:[%s3 + $0x130] sm:$0xf]
      %v651 = vld [vmem:[%s3 + $0x134] sm:$0xf]
      %v652 = vld [vmem:[%s3 + $0x138] sm:$0xf]
      %v653 = vld [vmem:[%s3 + $0x13c] sm:$0xf]
      %v654 = vld [vmem:[%s3 + $0x140] sm:$0xf]
      %v655 = vld [vmem:[%s3 + $0x144] sm:$0xf]
      %v656 = vld [vmem:[%s3 + $0x148] sm:$0xf]
      %v657 = vld [vmem:[%s3 + $0x14c] sm:$0xf]
      %v658 = vld [vmem:[%s3 + $0x150] sm:$0xf]
      %v659 = vld [vmem:[%s3 + $0x154] sm:$0xf]
      %v660 = vld [vmem:[%s3 + $0x158] sm:$0xf]
      %v661 = vld [vmem:[%s3 + $0x15c] sm:$0xf]
      %v662 = vld [vmem:[%s3 + $0x160] sm:$0xf]
      %v663 = vld [vmem:[%s3 + $0x164] sm:$0xf]
      %v664 = vld [vmem:[%s3 + $0x168] sm:$0xf]
      %v665 = vld [vmem:[%s3 + $0x16c] sm:$0xf]
      %v666 = vld [vmem:[%s3 + $0x170] sm:$0xf]
      %v667 = vld [vmem:[%s3 + $0x174] sm:$0xf]
      %v668 = vld [vmem:[%s3 + $0x178] sm:$0xf]
      %v669 = vld [vmem:[%s3 + $0x17c] sm:$0xf]
      %v670 = vld [vmem:[%s4] sm:$0x1]
      %v672 = vperm.slane %v670, 0
      %v770 = vunpack.c.l.b16 %v574
      %v771 = vunpack.c.l.b16 %v575
      %v772 = vunpack.c.l.b16 %v576
      %v773 = vunpack.c.l.b16 %v577
      %v774 = vunpack.c.l.b16 %v578
      %v775 = vunpack.c.l.b16 %v579
      %v776 = vunpack.c.l.b16 %v580
      %v777 = vunpack.c.l.b16 %v581
      %v778 = vunpack.c.l.b16 %v582
      %v779 = vunpack.c.l.b16 %v583
      %v780 = vunpack.c.l.b16 %v584
      %v781 = vunpack.c.l.b16 %v585
      %v782 = vunpack.c.l.b16 %v586
      %v783 = vunpack.c.l.b16 %v587
      %v784 = vunpack.c.l.b16 %v588
      %v785 = vunpack.c.l.b16 %v589
      %v786 = vunpack.c.l.b16 %v590
      %v787 = vunpack.c.l.b16 %v591
      %v788 = vunpack.c.l.b16 %v592
      %v789 = vunpack.c.l.b16 %v593
      %v790 = vunpack.c.l.b16 %v594
      %v791 = vunpack.c.l.b16 %v595
      %v792 = vunpack.c.l.b16 %v596
      %v793 = vunpack.c.l.b16 %v597
      %v794 = vunpack.c.l.b16 %v598
      %v795 = vunpack.c.l.b16 %v599
      %v796 = vunpack.c.l.b16 %v600
      %v797 = vunpack.c.l.b16 %v601
      %v798 = vunpack.c.l.b16 %v602
      %v799 = vunpack.c.l.b16 %v603
      %v800 = vunpack.c.l.b16 %v604
      %v801 = vunpack.c.l.b16 %v605
      %v802 = vunpack.c.l.b16 %v606
      %v803 = vunpack.c.l.b16 %v607
      %v804 = vunpack.c.l.b16 %v608
      %v805 = vunpack.c.l.b16 %v609
      %v806 = vunpack.c.l.b16 %v610
      %v807 = vunpack.c.l.b16 %v611
      %v808 = vunpack.c.l.b16 %v612
      %v809 = vunpack.c.l.b16 %v613
      %v810 = vunpack.c.l.b16 %v614
      %v811 = vunpack.c.l.b16 %v615
      %v812 = vunpack.c.l.b16 %v616
      %v813 = vunpack.c.l.b16 %v617
      %v814 = vunpack.c.l.b16 %v618
      %v815 = vunpack.c.l.b16 %v619
      %v816 = vunpack.c.l.b16 %v620
      %v817 = vunpack.c.l.b16 %v621
      %v818 = vunpack.c.l.b16 %v622
      %v819 = vunpack.c.l.b16 %v623
      %v820 = vunpack.c.l.b16 %v624
      %v821 = vunpack.c.l.b16 %v625
      %v822 = vunpack.c.l.b16 %v626
      %v823 = vunpack.c.l.b16 %v627
      %v824 = vunpack.c.l.b16 %v628
      %v825 = vunpack.c.l.b16 %v629
      %v826 = vunpack.c.l.b16 %v630
      %v827 = vunpack.c.l.b16 %v631
      %v828 = vunpack.c.l.b16 %v632
      %v829 = vunpack.c.l.b16 %v633
      %v830 = vunpack.c.l.b16 %v634
      %v831 = vunpack.c.l.b16 %v635
      %v832 = vunpack.c.l.b16 %v636
      %v833 = vunpack.c.l.b16 %v637
      %v834 = vunpack.c.l.b16 %v638
      %v835 = vunpack.c.l.b16 %v639
      %v836 = vunpack.c.l.b16 %v640
      %v837 = vunpack.c.l.b16 %v641
      %v838 = vunpack.c.l.b16 %v642
      %v839 = vunpack.c.l.b16 %v643
      %v840 = vunpack.c.l.b16 %v644
      %v841 = vunpack.c.l.b16 %v645
      %v842 = vunpack.c.l.b16 %v646
      %v843 = vunpack.c.l.b16 %v647
      %v844 = vunpack.c.l.b16 %v648
      %v845 = vunpack.c.l.b16 %v649
      %v846 = vunpack.c.l.b16 %v650
      %v847 = vunpack.c.l.b16 %v651
      %v848 = vunpack.c.l.b16 %v652
      %v849 = vunpack.c.l.b16 %v653
      %v850 = vunpack.c.l.b16 %v654
      %v851 = vunpack.c.l.b16 %v655
      %v852 = vunpack.c.l.b16 %v656
      %v853 = vunpack.c.l.b16 %v657
      %v854 = vunpack.c.l.b16 %v658
      %v855 = vunpack.c.l.b16 %v659
      %v856 = vunpack.c.l.b16 %v660
      %v857 = vunpack.c.l.b16 %v661
      %v858 = vunpack.c.l.b16 %v662
      %v859 = vunpack.c.l.b16 %v663
      %v860 = vunpack.c.l.b16 %v664
      %v861 = vunpack.c.l.b16 %v665
      %v862 = vunpack.c.l.b16 %v666
      %v863 = vunpack.c.l.b16 %v667
      %v864 = vunpack.c.l.b16 %v668
      %v865 = vunpack.c.l.b16 %v669
      %v866 = vpack.c.b16 %v771, %v770
      %v867 = vpack.c.b16 %v773, %v772
      %v868 = vpack.c.b16 %v775, %v774
      %v869 = vpack.c.b16 %v777, %v776
      %v870 = vpack.c.b16 %v779, %v778
      %v871 = vpack.c.b16 %v781, %v780
      %v872 = vpack.c.b16 %v783, %v782
      %v873 = vpack.c.b16 %v785, %v784
      %v874 = vpack.c.b16 %v787, %v786
      %v875 = vpack.c.b16 %v789, %v788
      %v876 = vpack.c.b16 %v791, %v790
      %v877 = vpack.c.b16 %v793, %v792
      %v878 = vpack.c.b16 %v795, %v794
      %v879 = vpack.c.b16 %v797, %v796
      %v880 = vpack.c.b16 %v799, %v798
      %v881 = vpack.c.b16 %v801, %v800
      %v882 = vpack.c.b16 %v803, %v802
      %v883 = vpack.c.b16 %v805, %v804
      %v884 = vpack.c.b16 %v807, %v806
      %v885 = vpack.c.b16 %v809, %v808
      %v886 = vpack.c.b16 %v811, %v810
      %v887 = vpack.c.b16 %v813, %v812
      %v888 = vpack.c.b16 %v815, %v814
      %v889 = vpack.c.b16 %v817, %v816
      %v890 = vpack.c.b16 %v819, %v818
      %v891 = vpack.c.b16 %v821, %v820
      %v892 = vpack.c.b16 %v823, %v822
      %v893 = vpack.c.b16 %v825, %v824
      %v894 = vpack.c.b16 %v827, %v826
      %v895 = vpack.c.b16 %v829, %v828
      %v896 = vpack.c.b16 %v831, %v830
      %v897 = vpack.c.b16 %v833, %v832
      %v898 = vpack.c.b16 %v835, %v834
      %v899 = vpack.c.b16 %v837, %v836
      %v900 = vpack.c.b16 %v839, %v838
      %v901 = vpack.c.b16 %v841, %v840
      %v902 = vpack.c.b16 %v843, %v842
      %v903 = vpack.c.b16 %v845, %v844
      %v904 = vpack.c.b16 %v847, %v846
      %v905 = vpack.c.b16 %v849, %v848
      %v906 = vpack.c.b16 %v851, %v850
      %v907 = vpack.c.b16 %v853, %v852
      %v908 = vpack.c.b16 %v855, %v854
      %v909 = vpack.c.b16 %v857, %v856
      %v910 = vpack.c.b16 %v859, %v858
      %v911 = vpack.c.b16 %v861, %v860
      %v912 = vpack.c.b16 %v863, %v862
      %v913 = vpack.c.b16 %v865, %v864
      %962 = vmatpush.bf16.msra.mxu0 %v873
      %963 = vmatpush.bf16.msra.mxu0 %v872
      %964 = vmatpush.bf16.msra.mxu0 %v871
      %965 = vmatpush.bf16.msra.mxu0 %v870
      %966 = vmatpush.bf16.msra.mxu0 %v869
      %967 = vmatpush.bf16.msra.mxu0 %v868
      %968 = vmatpush.bf16.msra.mxu0 %v867
      %969 = vmatpush.bf16.msra.mxu0 %v866
      %970 = vmatmul.bf16.gmra.mxu0 %v568
      %v971 = vpop.f32.mrf.mxu0
      %v972 = vadd.f32 %v672, %v971
      %v973 = vpop.f32.mrf.mxu0
      %974 = vdwg.mxu0
      %975 = vmatpush.bf16.msra.mxu0 %v881
      %976 = vmatpush.bf16.msra.mxu0 %v880
      %977 = vmatpush.bf16.msra.mxu0 %v879
      %978 = vmatpush.bf16.msra.mxu0 %v878
      %979 = vmatpush.bf16.msra.mxu0 %v877
      %980 = vmatpush.bf16.msra.mxu0 %v876
      %981 = vmatpush.bf16.msra.mxu0 %v875
      %982 = vmatpush.bf16.msra.mxu0 %v874
      %983 = vmatmul.bf16.gmra.mxu0 %v569
      %v984 = vpop.f32.mrf.mxu0
      %v985 = vadd.f32 %v972, %v984
      %v986 = vpop.f32.mrf.mxu0
      %987 = vdwg.mxu0
      %988 = vmatpush.bf16.msra.mxu0 %v889
      %989 = vmatpush.bf16.msra.mxu0 %v888
      %990 = vmatpush.bf16.msra.mxu0 %v887
      %991 = vmatpush.bf16.msra.mxu0 %v886
      %992 = vmatpush.bf16.msra.mxu0 %v885
      %993 = vmatpush.bf16.msra.mxu0 %v884
      %994 = vmatpush.bf16.msra.mxu0 %v883
      %995 = vmatpush.bf16.msra.mxu0 %v882
      %996 = vmatmul.bf16.gmra.mxu0 %v570
      %v997 = vpop.f32.mrf.mxu0
      %v998 = vadd.f32 %v985, %v997
      %v999 = vpop.f32.mrf.mxu0
      %1000 = vdwg.mxu0
      %1001 = vmatpush.bf16.msra.mxu0 %v897
      %1002 = vmatpush.bf16.msra.mxu0 %v896
      %1003 = vmatpush.bf16.msra.mxu0 %v895
      %1004 = vmatpush.bf16.msra.mxu0 %v894
      %1005 = vmatpush.bf16.msra.mxu0 %v893
      %1006 = vmatpush.bf16.msra.mxu0 %v892
      %1007 = vmatpush.bf16.msra.mxu0 %v891
      %1008 = vmatpush.bf16.msra.mxu0 %v890
      %1009 = vmatmul.bf16.gmra.mxu0 %v571
      %v1010 = vpop.f32.mrf.mxu0
      %v1011 = vadd.f32 %v998, %v1010
      %v1012 = vpop.f32.mrf.mxu0
      %1013 = vdwg.mxu0
      %1014 = vmatpush.bf16.msra.mxu0 %v905
      %1015 = vmatpush.bf16.msra.mxu0 %v904
      %1016 = vmatpush.bf16.msra.mxu0 %v903
      %1017 = vmatpush.bf16.msra.mxu0 %v902
      %1018 = vmatpush.bf16.msra.mxu0 %v901
      %1019 = vmatpush.bf16.msra.mxu0 %v900
      %1020 = vmatpush.bf16.msra.mxu0 %v899
      %1021 = vmatpush.bf16.msra.mxu0 %v898
      %1022 = vmatmul.bf16.gmra.mxu0 %v572
      %v1023 = vpop.f32.mrf.mxu0
      %v1024 = vadd.f32 %v1011, %v1023
      %v1025 = vpop.f32.mrf.mxu0
      %1026 = vdwg.mxu0
      %1027 = vmatpush.bf16.msra.mxu0 %v913
      %1028 = vmatpush.bf16.msra.mxu0 %v912
      %1029 = vmatpush.bf16.msra.mxu0 %v911
      %1030 = vmatpush.bf16.msra.mxu0 %v910
      %1031 = vmatpush.bf16.msra.mxu0 %v909
      %1032 = vmatpush.bf16.msra.mxu0 %v908
      %1033 = vmatpush.bf16.msra.mxu0 %v907
      %1034 = vmatpush.bf16.msra.mxu0 %v906
      %1035 = vmatmul.bf16.gmra.mxu0 %v573
      %v1036 = vpop.f32.mrf.mxu0
      %v1037 = vadd.f32 %v1024, %v1036
      %v1038 = vpop.f32.mrf.mxu0
      %1039 = vdwg.mxu0
      %v1040 = vmax.f32 %v1037, 0.0
      %v1041 = vpack.c.bf16 %v1040, %v1040
      %1042 = vst [vmem:[%s364] sm:$0xf] %v1041
      %v1044 = vrot.slane %v1040, 7
      %v1046 = vsel %vm565, 0.0, %v1044
      %v1047 = vrot.slane %v1040, 1
      %vm1049 = vcmask 1046528
      %v1050 = vsel %vm1049, %v1047, 0.0
      %v1051 = vpack.c.bf16 %v1046, %v1046
      %v1052 = vpack.c.bf16 %v1050, %v1050
      %v1053 = vld [vmem:[%s5] sm:$0xf]
      %v1054 = vld [vmem:[%s5 + $0x4] sm:$0xf]
      %v1055 = vld [vmem:[%s5 + $0x8] sm:$0xf]
      %v1056 = vld [vmem:[%s5 + $0xc] sm:$0xf]
      %v1057 = vld [vmem:[%s5 + $0x10] sm:$0xf]
      %v1058 = vld [vmem:[%s5 + $0x14] sm:$0xf]
      %v1059 = vld [vmem:[%s5 + $0x18] sm:$0xf]
      %v1060 = vld [vmem:[%s5 + $0x1c] sm:$0xf]
      %v1061 = vld [vmem:[%s5 + $0x20] sm:$0xf]
      %v1062 = vld [vmem:[%s5 + $0x24] sm:$0xf]
      %v1063 = vld [vmem:[%s5 + $0x28] sm:$0xf]
      %v1064 = vld [vmem:[%s5 + $0x2c] sm:$0xf]
      %v1065 = vld [vmem:[%s5 + $0x30] sm:$0xf]
      %v1066 = vld [vmem:[%s5 + $0x34] sm:$0xf]
      %v1067 = vld [vmem:[%s5 + $0x38] sm:$0xf]
      %v1068 = vld [vmem:[%s5 + $0x3c] sm:$0xf]
      %v1069 = vld [vmem:[%s5 + $0x40] sm:$0xf]
      %v1070 = vld [vmem:[%s5 + $0x44] sm:$0xf]
      %v1071 = vld [vmem:[%s5 + $0x48] sm:$0xf]
      %v1072 = vld [vmem:[%s5 + $0x4c] sm:$0xf]
      %v1073 = vld [vmem:[%s5 + $0x50] sm:$0xf]
      %v1074 = vld [vmem:[%s5 + $0x54] sm:$0xf]
      %v1075 = vld [vmem:[%s5 + $0x58] sm:$0xf]
      %v1076 = vld [vmem:[%s5 + $0x5c] sm:$0xf]
      %v1077 = vld [vmem:[%s5 + $0x60] sm:$0xf]
      %v1078 = vld [vmem:[%s5 + $0x64] sm:$0xf]
      %v1079 = vld [vmem:[%s5 + $0x68] sm:$0xf]
      %v1080 = vld [vmem:[%s5 + $0x6c] sm:$0xf]
      %v1081 = vld [vmem:[%s5 + $0x70] sm:$0xf]
      %v1082 = vld [vmem:[%s5 + $0x74] sm:$0xf]
      %v1083 = vld [vmem:[%s5 + $0x78] sm:$0xf]
      %v1084 = vld [vmem:[%s5 + $0x7c] sm:$0xf]
      %v1085 = vld [vmem:[%s5 + $0x80] sm:$0xf]
      %v1086 = vld [vmem:[%s5 + $0x84] sm:$0xf]
      %v1087 = vld [vmem:[%s5 + $0x88] sm:$0xf]
      %v1088 = vld [vmem:[%s5 + $0x8c] sm:$0xf]
      %v1089 = vld [vmem:[%s5 + $0x90] sm:$0xf]
      %v1090 = vld [vmem:[%s5 + $0x94] sm:$0xf]
      %v1091 = vld [vmem:[%s5 + $0x98] sm:$0xf]
      %v1092 = vld [vmem:[%s5 + $0x9c] sm:$0xf]
      %v1093 = vld [vmem:[%s5 + $0xa0] sm:$0xf]
      %v1094 = vld [vmem:[%s5 + $0xa4] sm:$0xf]
      %v1095 = vld [vmem:[%s5 + $0xa8] sm:$0xf]
      %v1096 = vld [vmem:[%s5 + $0xac] sm:$0xf]
      %v1097 = vld [vmem:[%s5 + $0xb0] sm:$0xf]
      %v1098 = vld [vmem:[%s5 + $0xb4] sm:$0xf]
      %v1099 = vld [vmem:[%s5 + $0xb8] sm:$0xf]
      %v1100 = vld [vmem:[%s5 + $0xbc] sm:$0xf]
      %v1101 = vld [vmem:[%s6] sm:$0x1]
      %v1103 = vperm.slane %v1101, 0
      %v1153 = vunpack.c.l.b16 %v1053
      %v1154 = vunpack.c.l.b16 %v1054
      %v1155 = vunpack.c.l.b16 %v1055
      %v1156 = vunpack.c.l.b16 %v1056
      %v1157 = vunpack.c.l.b16 %v1057
      %v1158 = vunpack.c.l.b16 %v1058
      %v1159 = vunpack.c.l.b16 %v1059
      %v1160 = vunpack.c.l.b16 %v1060
      %v1161 = vunpack.c.l.b16 %v1061
      %v1162 = vunpack.c.l.b16 %v1062
      %v1163 = vunpack.c.l.b16 %v1063
      %v1164 = vunpack.c.l.b16 %v1064
      %v1165 = vunpack.c.l.b16 %v1065
      %v1166 = vunpack.c.l.b16 %v1066
      %v1167 = vunpack.c.l.b16 %v1067
      %v1168 = vunpack.c.l.b16 %v1068
      %v1169 = vunpack.c.l.b16 %v1069
      %v1170 = vunpack.c.l.b16 %v1070
      %v1171 = vunpack.c.l.b16 %v1071
      %v1172 = vunpack.c.l.b16 %v1072
      %v1173 = vunpack.c.l.b16 %v1073
      %v1174 = vunpack.c.l.b16 %v1074
      %v1175 = vunpack.c.l.b16 %v1075
      %v1176 = vunpack.c.l.b16 %v1076
      %v1177 = vunpack.c.l.b16 %v1077
      %v1178 = vunpack.c.l.b16 %v1078
      %v1179 = vunpack.c.l.b16 %v1079
      %v1180 = vunpack.c.l.b16 %v1080
      %v1181 = vunpack.c.l.b16 %v1081
      %v1182 = vunpack.c.l.b16 %v1082
      %v1183 = vunpack.c.l.b16 %v1083
      %v1184 = vunpack.c.l.b16 %v1084
      %v1185 = vunpack.c.l.b16 %v1085
      %v1186 = vunpack.c.l.b16 %v1086
      %v1187 = vunpack.c.l.b16 %v1087
      %v1188 = vunpack.c.l.b16 %v1088
      %v1189 = vunpack.c.l.b16 %v1089
      %v1190 = vunpack.c.l.b16 %v1090
      %v1191 = vunpack.c.l.b16 %v1091
      %v1192 = vunpack.c.l.b16 %v1092
      %v1193 = vunpack.c.l.b16 %v1093
      %v1194 = vunpack.c.l.b16 %v1094
      %v1195 = vunpack.c.l.b16 %v1095
      %v1196 = vunpack.c.l.b16 %v1096
      %v1197 = vunpack.c.l.b16 %v1097
      %v1198 = vunpack.c.l.b16 %v1098
      %v1199 = vunpack.c.l.b16 %v1099
      %v1200 = vunpack.c.l.b16 %v1100
      %v1201 = vpack.c.b16 %v1154, %v1153
      %v1202 = vpack.c.b16 %v1156, %v1155
      %v1203 = vpack.c.b16 %v1158, %v1157
      %v1204 = vpack.c.b16 %v1160, %v1159
      %v1205 = vpack.c.b16 %v1162, %v1161
      %v1206 = vpack.c.b16 %v1164, %v1163
      %v1207 = vpack.c.b16 %v1166, %v1165
      %v1208 = vpack.c.b16 %v1168, %v1167
      %v1209 = vpack.c.b16 %v1170, %v1169
      %v1210 = vpack.c.b16 %v1172, %v1171
      %v1211 = vpack.c.b16 %v1174, %v1173
      %v1212 = vpack.c.b16 %v1176, %v1175
      %v1213 = vpack.c.b16 %v1178, %v1177
      %v1214 = vpack.c.b16 %v1180, %v1179
      %v1215 = vpack.c.b16 %v1182, %v1181
      %v1216 = vpack.c.b16 %v1184, %v1183
      %v1217 = vpack.c.b16 %v1186, %v1185
      %v1218 = vpack.c.b16 %v1188, %v1187
      %v1219 = vpack.c.b16 %v1190, %v1189
      %v1220 = vpack.c.b16 %v1192, %v1191
      %v1221 = vpack.c.b16 %v1194, %v1193
      %v1222 = vpack.c.b16 %v1196, %v1195
      %v1223 = vpack.c.b16 %v1198, %v1197
      %v1224 = vpack.c.b16 %v1200, %v1199
      %1249 = vmatpush.bf16.msra.mxu0 %v1208
      %1250 = vmatpush.bf16.msra.mxu0 %v1207
      %1251 = vmatpush.bf16.msra.mxu0 %v1206
      %1252 = vmatpush.bf16.msra.mxu0 %v1205
      %1253 = vmatpush.bf16.msra.mxu0 %v1204
      %1254 = vmatpush.bf16.msra.mxu0 %v1203
      %1255 = vmatpush.bf16.msra.mxu0 %v1202
      %1256 = vmatpush.bf16.msra.mxu0 %v1201
      %1257 = vmatmul.bf16.gmra.mxu0 %v1051
      %v1258 = vpop.f32.mrf.mxu0
      %v1259 = vadd.f32 %v1103, %v1258
      %v1260 = vpop.f32.mrf.mxu0
      %1261 = vdwg.mxu0
      %1262 = vmatpush.bf16.msra.mxu0 %v1216
      %1263 = vmatpush.bf16.msra.mxu0 %v1215
      %1264 = vmatpush.bf16.msra.mxu0 %v1214
      %1265 = vmatpush.bf16.msra.mxu0 %v1213
      %1266 = vmatpush.bf16.msra.mxu0 %v1212
      %1267 = vmatpush.bf16.msra.mxu0 %v1211
      %1268 = vmatpush.bf16.msra.mxu0 %v1210
      %1269 = vmatpush.bf16.msra.mxu0 %v1209
      %1270 = vmatmul.bf16.gmra.mxu0 %v1041
      %v1271 = vpop.f32.mrf.mxu0
      %v1272 = vadd.f32 %v1259, %v1271
      %v1273 = vpop.f32.mrf.mxu0
      %1274 = vdwg.mxu0
      %1275 = vmatpush.bf16.msra.mxu0 %v1224
      %1276 = vmatpush.bf16.msra.mxu0 %v1223
      %1277 = vmatpush.bf16.msra.mxu0 %v1222
      %1278 = vmatpush.bf16.msra.mxu0 %v1221
      %1279 = vmatpush.bf16.msra.mxu0 %v1220
      %1280 = vmatpush.bf16.msra.mxu0 %v1219
      %1281 = vmatpush.bf16.msra.mxu0 %v1218
      %1282 = vmatpush.bf16.msra.mxu0 %v1217
      %1283 = vmatmul.bf16.gmra.mxu0 %v1052
      %v1284 = vpop.f32.mrf.mxu0
      %v1285 = vadd.f32 %v1272, %v1284
      %v1286 = vpop.f32.mrf.mxu0
      %1287 = vdwg.mxu0
      %v1288 = vmax.f32 %v1285, 0.0
      %v1289 = vpack.c.bf16 %v1288, %v1288
      %v1290 = vld [vmem:[%s7] sm:$0xf]
      %v1291 = vld [vmem:[%s7 + $0x4] sm:$0xf]
      %v1292 = vld [vmem:[%s7 + $0x8] sm:$0xf]
      %v1293 = vld [vmem:[%s7 + $0xc] sm:$0xf]
      %v1294 = vld [vmem:[%s7 + $0x10] sm:$0xf]
      %v1295 = vld [vmem:[%s7 + $0x14] sm:$0xf]
      %v1296 = vld [vmem:[%s7 + $0x18] sm:$0xf]
      %v1297 = vld [vmem:[%s7 + $0x1c] sm:$0xf]
      %v1298 = vld [vmem:[%s7 + $0x20] sm:$0xf]
      %v1299 = vld [vmem:[%s7 + $0x24] sm:$0xf]
      %v1300 = vld [vmem:[%s7 + $0x28] sm:$0xf]
      %v1301 = vld [vmem:[%s7 + $0x2c] sm:$0xf]
      %v1302 = vld [vmem:[%s7 + $0x30] sm:$0xf]
      %v1303 = vld [vmem:[%s7 + $0x34] sm:$0xf]
      %v1304 = vld [vmem:[%s7 + $0x38] sm:$0xf]
      %v1305 = vld [vmem:[%s7 + $0x3c] sm:$0xf]
      %v1306 = vld [vmem:[%s8] sm:$0x1]
      %v1308 = vperm.slane %v1306, 0
      %v1326 = vunpack.c.l.b16 %v1290
      %v1327 = vunpack.c.l.b16 %v1291
      %v1328 = vunpack.c.l.b16 %v1292
      %v1329 = vunpack.c.l.b16 %v1293
      %v1330 = vunpack.c.l.b16 %v1294
      %v1331 = vunpack.c.l.b16 %v1295
      %v1332 = vunpack.c.l.b16 %v1296
      %v1333 = vunpack.c.l.b16 %v1297
      %v1334 = vunpack.c.l.b16 %v1298
      %v1335 = vunpack.c.l.b16 %v1299
      %v1336 = vunpack.c.l.b16 %v1300
      %v1337 = vunpack.c.l.b16 %v1301
      %v1338 = vunpack.c.l.b16 %v1302
      %v1339 = vunpack.c.l.b16 %v1303
      %v1340 = vunpack.c.l.b16 %v1304
      %v1341 = vunpack.c.l.b16 %v1305
      %v1342 = vpack.c.b16 %v1327, %v1326
      %v1343 = vpack.c.b16 %v1329, %v1328
      %v1344 = vpack.c.b16 %v1331, %v1330
      %v1345 = vpack.c.b16 %v1333, %v1332
      %v1346 = vpack.c.b16 %v1335, %v1334
      %v1347 = vpack.c.b16 %v1337, %v1336
      %v1348 = vpack.c.b16 %v1339, %v1338
      %v1349 = vpack.c.b16 %v1341, %v1340
      %1358 = vmatpush.bf16.msra.mxu0 %v1349
      %1359 = vmatpush.bf16.msra.mxu0 %v1348
      %1360 = vmatpush.bf16.msra.mxu0 %v1347
      %1361 = vmatpush.bf16.msra.mxu0 %v1346
      %1362 = vmatpush.bf16.msra.mxu0 %v1345
      %1363 = vmatpush.bf16.msra.mxu0 %v1344
      %1364 = vmatpush.bf16.msra.mxu0 %v1343
      %1365 = vmatpush.bf16.msra.mxu0 %v1342
      %1366 = vmatmul.bf16.gmra.mxu0 %v1289
      %v1367 = vpop.f32.mrf.mxu0
      %v1368 = vadd.f32 %v1308, %v1367
      %v1369 = vpop.f32.mrf.mxu0
      %1370 = vdwg.mxu0
      %1371 = vst [vmem:[%s368] sm:$0xff] %v1368
      %p1372 = scmp.lt.s32.totalorder %s22, 1
      %s1373 = scalar_select %p1372, %s22, 1
      %s1374 = smul.addr %s1373, 4
      %s1375 = scalar_lea.vmem %s9, %s1374
      %p1376 = scmp.lt.s32.totalorder %s22, 1
      %s1377 = scalar_select %p1376, %s22, 1
      %s1378 = smul.addr %s1377, 8
      %s1379 = scalar_lea.vmem %s10, %s1378
      // Predicated region
      $region57: #{generalized_rcnn_forward.2} parent=55 // pred_check
        %p1380 = pneg %p234
      $region58: #{generalized_rcnn_forward.2} parent=55 // pred_check_branch
        %1382 = sbr.rel (%p1380) target = $region60
      $region59: #{generalized_rcnn_forward.2} parent=55 // pred_region
        _
      $region60: #{generalized_rcnn_forward.2} parent=55 // pred_fallthru
        _
      // Predicated region
      $region61: #{generalized_rcnn_forward.2} parent=55 // pred_check
        %p1383 = pneg %p260
      $region62: #{generalized_rcnn_forward.2} parent=55 // pred_check_branch
        %1385 = sbr.rel (%p1383) target = $region64
      $region63: #{generalized_rcnn_forward.2} parent=55 // pred_region
        _
      $region64: #{generalized_rcnn_forward.2} parent=55 // pred_fallthru
        _
    $region56: #{generalized_rcnn_forward.2} parent=5 // pred_fallthru
      _
    %p1386 = scmp.le.s32.totalorder 2, %s17
    // Predicated region
    $region65: #{generalized_rcnn_forward.2} parent=5 // pred_check
      %p1387 = pneg %p1386
    $region66: #{generalized_rcnn_forward.2} parent=5 // pred_check_branch
      %1389 = sbr.rel (%p1387) target = $region68
    $region67: #{generalized_rcnn_forward.2} parent=5 // pred_region
      %s1390 = ssub.s32 %s17, 2
      // Predicated region
      $region69: #{generalized_rcnn_forward.2} parent=67 // pred_check
        %p1391 = pneg %p240
      $region70: #{generalized_rcnn_forward.2} parent=67 // pred_check_branch
        %1393 = sbr.rel (%p1391) target = $region72
      $region71: #{generalized_rcnn_forward.2} parent=67 // pred_region
        %p1394 = scmp.lt.s32.totalorder %s23, 1
        %s1395 = scalar_select %p1394, %s23, 1
        %s1396 = smul.addr %s1395, 4
        %s1397 = scalar_lea.vmem %s9, %s1396
      $region72: #{generalized_rcnn_forward.2} parent=67 // pred_fallthru
        _
      // Predicated region
      $region73: #{generalized_rcnn_forward.2} parent=67 // pred_check
        %p1398 = pneg %p266
      $region74: #{generalized_rcnn_forward.2} parent=67 // pred_check_branch
        %1400 = sbr.rel (%p1398) target = $region76
      $region75: #{generalized_rcnn_forward.2} parent=67 // pred_region
        %p1401 = scmp.lt.s32.totalorder %s23, 1
        %s1402 = scalar_select %p1401, %s23, 1
        %s1403 = smul.addr %s1402, 8
        %s1404 = scalar_lea.vmem %s10, %s1403
      $region76: #{generalized_rcnn_forward.2} parent=67 // pred_fallthru
        _
    $region68: #{generalized_rcnn_forward.2} parent=5 // pred_fallthru
      _
  $region6: #{generalized_rcnn_forward.2} parent=0 // loop_footer
    %s21 = sadd.s32 1, %s17
  $region7: #{generalized_rcnn_forward.2} parent=0 // loop_footer_branch
    %16 = sbr.rel target = $region3
  $region8: #{generalized_rcnn_forward.2} parent=0 // loop_exit
    _

// kernel: generalized_rcnn_forward.3
$region0: #{generalized_rcnn_forward.3}
  #allocation0 [shape = 'u32[]', space=smem, size = 0x4, offset = 0x4, fixed_abs, tag = 'smem constant byte address 0x4 - core index']
  #allocation1 [shape = 'u32[72,128]{1,0:T(1,128)}', space=vmem, size = 0x9000, scoped, tag = 'internal scratch']
  %s0 = inlined_call_operand.vmem [shape: bf16[16,256], index: 0, kind: input, shape index: {}]
  %s1 = inlined_call_operand.vmem [shape: bf16[256,32], index: 1, kind: input, shape index: {}]
  %s2 = inlined_call_operand.vmem [shape: f32[1,32], index: 2, kind: input, shape index: {}]
  %s3 = inlined_call_operand.vmem [shape: bf16[32,32], index: 3, kind: input, shape index: {}]
  %s4 = inlined_call_operand.vmem [shape: f32[1,32], index: 4, kind: input, shape index: {}]
  %s5 = inlined_call_operand.vmem [shape: bf16[32,128], index: 5, kind: input, shape index: {}]
  %s6 = inlined_call_operand.vmem [shape: f32[1,128], index: 6, kind: input, shape index: {}]
  %s7 = inlined_call_operand.vmem [shape: f32[16,128], index: 7, kind: output, shape index: {}]
  %s8 = sld [smem:[#allocation0]]
  $region38: #{generalized_rcnn_forward.3} parent=0
    _
  %s10 = ssub.s32 1, %s8
  %s11 = scalar_select 0, %s10, %s8
  // Predicated region
  $region2: #{generalized_rcnn_forward.3} parent=0 // pred_check
    _
  $region3: #{generalized_rcnn_forward.3} parent=0 // pred_check_branch
    %13 = sbr.rel (0) target = $region5
  $region4: #{generalized_rcnn_forward.3} parent=0 // pred_region
    _
  $region5: #{generalized_rcnn_forward.3} parent=0 // pred_fallthru
    _
  // Predicated region
  $region6: #{generalized_rcnn_forward.3} parent=0 // pred_check
    _
  $region7: #{generalized_rcnn_forward.3} parent=0 // pred_check_branch
    %15 = sbr.rel (0) target = $region9
  $region8: #{generalized_rcnn_forward.3} parent=0 // pred_region
    _
  $region9: #{generalized_rcnn_forward.3} parent=0 // pred_fallthru
    _
  // Predicated region
  $region10: #{generalized_rcnn_forward.3} parent=0 // pred_check
    _
  $region11: #{generalized_rcnn_forward.3} parent=0 // pred_check_branch
    %17 = sbr.rel (0) target = $region13
  $region12: #{generalized_rcnn_forward.3} parent=0 // pred_region
    _
  $region13: #{generalized_rcnn_forward.3} parent=0 // pred_fallthru
    _
  // Predicated region
  $region14: #{generalized_rcnn_forward.3} parent=0 // pred_check
    _
  $region15: #{generalized_rcnn_forward.3} parent=0 // pred_check_branch
    %19 = sbr.rel (0) target = $region17
  $region16: #{generalized_rcnn_forward.3} parent=0 // pred_region
    _
  $region17: #{generalized_rcnn_forward.3} parent=0 // pred_fallthru
    _
  // Predicated region
  $region18: #{generalized_rcnn_forward.3} parent=0 // pred_check
    _
  $region19: #{generalized_rcnn_forward.3} parent=0 // pred_check_branch
    %21 = sbr.rel (0) target = $region21
  $region20: #{generalized_rcnn_forward.3} parent=0 // pred_region
    _
  $region21: #{generalized_rcnn_forward.3} parent=0 // pred_fallthru
    _
  // Predicated region
  $region22: #{generalized_rcnn_forward.3} parent=0 // pred_check
    _
  $region23: #{generalized_rcnn_forward.3} parent=0 // pred_check_branch
    %23 = sbr.rel (0) target = $region25
  $region24: #{generalized_rcnn_forward.3} parent=0 // pred_region
    _
  $region25: #{generalized_rcnn_forward.3} parent=0 // pred_fallthru
    _
  // Predicated region
  $region26: #{generalized_rcnn_forward.3} parent=0 // pred_check
    _
  $region27: #{generalized_rcnn_forward.3} parent=0 // pred_check_branch
    %25 = sbr.rel (0) target = $region29
  $region28: #{generalized_rcnn_forward.3} parent=0 // pred_region
    _
  $region29: #{generalized_rcnn_forward.3} parent=0 // pred_fallthru
    _
  %v27 = vld [vmem:[%s0] sm:$0xff]
  %v28 = vld [vmem:[%s0 + $0x8] sm:$0xff]
  %v29 = vld [vmem:[%s1] sm:$0xf]
  %v30 = vld [vmem:[%s1 + $0x4] sm:$0xf]
  %v31 = vld [vmem:[%s1 + $0x8] sm:$0xf]
  %v32 = vld [vmem:[%s1 + $0xc] sm:$0xf]
  %v33 = vld [vmem:[%s1 + $0x10] sm:$0xf]
  %v34 = vld [vmem:[%s1 + $0x14] sm:$0xf]
  %v35 = vld [vmem:[%s1 + $0x18] sm:$0xf]
  %v36 = vld [vmem:[%s1 + $0x1c] sm:$0xf]
  %v37 = vld [vmem:[%s1 + $0x20] sm:$0xf]
  %v38 = vld [vmem:[%s1 + $0x24] sm:$0xf]
  %v39 = vld [vmem:[%s1 + $0x28] sm:$0xf]
  %v40 = vld [vmem:[%s1 + $0x2c] sm:$0xf]
  %v41 = vld [vmem:[%s1 + $0x30] sm:$0xf]
  %v42 = vld [vmem:[%s1 + $0x34] sm:$0xf]
  %v43 = vld [vmem:[%s1 + $0x38] sm:$0xf]
  %v44 = vld [vmem:[%s1 + $0x3c] sm:$0xf]
  %v45 = vld [vmem:[%s1 + $0x40] sm:$0xf]
  %v46 = vld [vmem:[%s1 + $0x44] sm:$0xf]
  %v47 = vld [vmem:[%s1 + $0x48] sm:$0xf]
  %v48 = vld [vmem:[%s1 + $0x4c] sm:$0xf]
  %v49 = vld [vmem:[%s1 + $0x50] sm:$0xf]
  %v50 = vld [vmem:[%s1 + $0x54] sm:$0xf]
  %v51 = vld [vmem:[%s1 + $0x58] sm:$0xf]
  %v52 = vld [vmem:[%s1 + $0x5c] sm:$0xf]
  %v53 = vld [vmem:[%s1 + $0x60] sm:$0xf]
  %v54 = vld [vmem:[%s1 + $0x64] sm:$0xf]
  %v55 = vld [vmem:[%s1 + $0x68] sm:$0xf]
  %v56 = vld [vmem:[%s1 + $0x6c] sm:$0xf]
  %v57 = vld [vmem:[%s1 + $0x70] sm:$0xf]
  %v58 = vld [vmem:[%s1 + $0x74] sm:$0xf]
  %v59 = vld [vmem:[%s1 + $0x78] sm:$0xf]
  %v60 = vld [vmem:[%s1 + $0x7c] sm:$0xf]
  %v61 = vld [vmem:[%s2] sm:$0x1]
  %v63 = vperm.slane %v61, 0
  %v67 = vunpack.c.l.b16 %v27
  %v68 = vunpack.c.h.b16 %v27
  %v69 = vunpack.c.l.b16 %v28
  %v70 = vunpack.c.h.b16 %v28
  %v71 = vpack.c.b16 %v69, %v67
  %v72 = vpack.c.b16 %v70, %v68
  %v107 = vunpack.c.l.b16 %v29
  %v108 = vunpack.c.l.b16 %v30
  %v109 = vunpack.c.l.b16 %v31
  %v110 = vunpack.c.l.b16 %v32
  %v111 = vunpack.c.l.b16 %v33
  %v112 = vunpack.c.l.b16 %v34
  %v113 = vunpack.c.l.b16 %v35
  %v114 = vunpack.c.l.b16 %v36
  %v115 = vunpack.c.l.b16 %v37
  %v116 = vunpack.c.l.b16 %v38
  %v117 = vunpack.c.l.b16 %v39
  %v118 = vunpack.c.l.b16 %v40
  %v119 = vunpack.c.l.b16 %v41
  %v120 = vunpack.c.l.b16 %v42
  %v121 = vunpack.c.l.b16 %v43
  %v122 = vunpack.c.l.b16 %v44
  %v123 = vunpack.c.l.b16 %v45
  %v124 = vunpack.c.l.b16 %v46
  %v125 = vunpack.c.l.b16 %v47
  %v126 = vunpack.c.l.b16 %v48
  %v127 = vunpack.c.l.b16 %v49
  %v128 = vunpack.c.l.b16 %v50
  %v129 = vunpack.c.l.b16 %v51
  %v130 = vunpack.c.l.b16 %v52
  %v131 = vunpack.c.l.b16 %v53
  %v132 = vunpack.c.l.b16 %v54
  %v133 = vunpack.c.l.b16 %v55
  %v134 = vunpack.c.l.b16 %v56
  %v135 = vunpack.c.l.b16 %v57
  %v136 = vunpack.c.l.b16 %v58
  %v137 = vunpack.c.l.b16 %v59
  %v138 = vunpack.c.l.b16 %v60
  %v139 = vpack.c.b16 %v108, %v107
  %v140 = vpack.c.b16 %v110, %v109
  %v141 = vpack.c.b16 %v112, %v111
  %v142 = vpack.c.b16 %v114, %v113
  %v143 = vpack.c.b16 %v116, %v115
  %v144 = vpack.c.b16 %v118, %v117
  %v145 = vpack.c.b16 %v120, %v119
  %v146 = vpack.c.b16 %v122, %v121
  %v147 = vpack.c.b16 %v124, %v123
  %v148 = vpack.c.b16 %v126, %v125
  %v149 = vpack.c.b16 %v128, %v127
  %v150 = vpack.c.b16 %v130, %v129
  %v151 = vpack.c.b16 %v132, %v131
  %v152 = vpack.c.b16 %v134, %v133
  %v153 = vpack.c.b16 %v136, %v135
  %v154 = vpack.c.b16 %v138, %v137
  %171 = vmatpush.bf16.msra.mxu0 %v146
  %172 = vmatpush.bf16.msra.mxu0 %v145
  %173 = vmatpush.bf16.msra.mxu0 %v144
  %174 = vmatpush.bf16.msra.mxu0 %v143
  %175 = vmatpush.bf16.msra.mxu0 %v142
  %176 = vmatpush.bf16.msra.mxu0 %v141
  %177 = vmatpush.bf16.msra.mxu0 %v140
  %178 = vmatpush.bf16.msra.mxu0 %v139
  %179 = vmatmul.bf16.gmra.mxu0 %v71
  %v180 = vpop.f32.mrf.mxu0
  %v181 = vadd.f32 %v63, %v180
  %v182 = vpop.f32.mrf.mxu0
  %v183 = vadd.f32 %v63, %v182
  %184 = vdwg.mxu0
  %185 = vmatpush.bf16.msra.mxu0 %v154
  %186 = vmatpush.bf16.msra.mxu0 %v153
  %187 = vmatpush.bf16.msra.mxu0 %v152
  %188 = vmatpush.bf16.msra.mxu0 %v151
  %189 = vmatpush.bf16.msra.mxu0 %v150
  %190 = vmatpush.bf16.msra.mxu0 %v149
  %191 = vmatpush.bf16.msra.mxu0 %v148
  %192 = vmatpush.bf16.msra.mxu0 %v147
  %193 = vmatmul.bf16.gmra.mxu0 %v72
  %v194 = vpop.f32.mrf.mxu0
  %v195 = vadd.f32 %v181, %v194
  %v196 = vpop.f32.mrf.mxu0
  %v197 = vadd.f32 %v183, %v196
  %198 = vdwg.mxu0
  %v199 = vmax.f32 %v195, 0.0
  %v200 = vmax.f32 %v197, 0.0
  %v201 = vpack.c.bf16 %v200, %v199
  %v202 = vld [vmem:[%s3] sm:$0xf]
  %v203 = vld [vmem:[%s3 + $0x4] sm:$0xf]
  %v204 = vld [vmem:[%s3 + $0x8] sm:$0xf]
  %v205 = vld [vmem:[%s3 + $0xc] sm:$0xf]
  %v206 = vld [vmem:[%s4] sm:$0x1]
  %v208 = vperm.slane %v206, 0
  %v214 = vunpack.c.l.b16 %v202
  %v215 = vunpack.c.l.b16 %v203
  %v216 = vunpack.c.l.b16 %v204
  %v217 = vunpack.c.l.b16 %v205
  %v218 = vpack.c.b16 %v215, %v214
  %v219 = vpack.c.b16 %v217, %v216
  %vm222 = vcmask 261120
  %v224 = vsel %vm222, %v201, 0
  %226 = vmatpush.bf16.msra.mxu0 0
  %227 = vmatpush.bf16.msra.mxu0 0
  %228 = vmatpush.bf16.msra.mxu0 0
  %229 = vmatpush.bf16.msra.mxu0 0
  %230 = vmatpush.bf16.msra.mxu0 0
  %231 = vmatpush.bf16.msra.mxu0 0
  %232 = vmatpush.bf16.msra.mxu0 %v219
  %233 = vmatpush.bf16.msra.mxu0 %v218
  %234 = vmatmul.bf16.gmra.mxu0 %v224
  %v235 = vpop.f32.mrf.mxu0
  %v236 = vadd.f32 %v208, %v235
  %v237 = vpop.f32.mrf.mxu0
  %v238 = vadd.f32 %v208, %v237
  %239 = vdwg.mxu0
  %v240 = vmax.f32 %v236, 0.0
  %v241 = vmax.f32 %v238, 0.0
  %v242 = vpack.c.bf16 %v241, %v240
  %v243 = vld [vmem:[%s5] sm:$0xf]
  %v244 = vld [vmem:[%s5 + $0x4] sm:$0xf]
  %v245 = vld [vmem:[%s5 + $0x8] sm:$0xf]
  %v246 = vld [vmem:[%s5 + $0xc] sm:$0xf]
  %v247 = vld [vmem:[%s6] sm:$0x1]
  %v249 = vperm.slane %v247, 0
  %v255 = vunpack.c.l.b16 %v243
  %v256 = vunpack.c.l.b16 %v244
  %v257 = vunpack.c.l.b16 %v245
  %v258 = vunpack.c.l.b16 %v246
  %v259 = vpack.c.b16 %v256, %v255
  %v260 = vpack.c.b16 %v258, %v257
  %v264 = vsel %vm222, %v242, 0
  %266 = vmatpush.bf16.msra.mxu0 0
  %267 = vmatpush.bf16.msra.mxu0 0
  %268 = vmatpush.bf16.msra.mxu0 0
  %269 = vmatpush.bf16.msra.mxu0 0
  %270 = vmatpush.bf16.msra.mxu0 0
  %271 = vmatpush.bf16.msra.mxu0 0
  %272 = vmatpush.bf16.msra.mxu0 %v260
  %273 = vmatpush.bf16.msra.mxu0 %v259
  %274 = vmatmul.bf16.gmra.mxu0 %v264
  %v275 = vpop.f32.mrf.mxu0
  %v276 = vadd.f32 %v249, %v275
  %v277 = vpop.f32.mrf.mxu0
  %v278 = vadd.f32 %v249, %v277
  %279 = vdwg.mxu0
  %280 = vst [vmem:[%s7] sm:$0xff] %v276
  %281 = vst [vmem:[%s7 + $0x8] sm:$0xff] %v278
  // Predicated region
  $region30: #{generalized_rcnn_forward.3} parent=0 // pred_check
    _
  $region31: #{generalized_rcnn_forward.3} parent=0 // pred_check_branch
    %283 = sbr.rel (0) target = $region33
  $region32: #{generalized_rcnn_forward.3} parent=0 // pred_region
    _
  $region33: #{generalized_rcnn_forward.3} parent=0 // pred_fallthru
    _
  // Predicated region
  $region34: #{generalized_rcnn_forward.3} parent=0 // pred_check
    _
  $region35: #{generalized_rcnn_forward.3} parent=0 // pred_check_branch
    %285 = sbr.rel (0) target = $region37
  $region36: #{generalized_rcnn_forward.3} parent=0 // pred_region
    _
  $region37: #{generalized_rcnn_forward.3} parent=0 // pred_fallthru
    _

</llo_original>
